<compile_context>
chip_gen: v7x
topology: tpu7x:2x2x1
jax: 0.10.0
libtpu: 0.0.40
codegen_flags: <defaults>
</compile_context>

<pallas_src>
import functools

import jax
import jax.numpy as jnp
from jax.experimental import pallas as pl
from jax.experimental.pallas import tpu as pltpu


def _lstm_value_kernel(xs_ref, xa_ref, ws_ref, wa_ref, whh_ref, b_ref,
                       fcw_ref, fcb_ref, h0_ref, c0_ref,
                       q_ref, hn_ref, cn_ref,
                       h_sc, c_sc, xg_sc, hall_sc):
    """grid = (batch_tiles, time_chunks); time chunks run sequentially per tile."""
    ci = pl.program_id(1)

    Tc, Bt, S = xs_ref.shape                 # time-major input slab
    A = xa_ref.shape[-1]
    Hp = h0_ref.shape[-1]                    # padded (128-multiple) hidden size
    mm_dtype = ws_ref.dtype                  # matmul operand dtype (bf16 default)

    # (Re)load the initial hidden state at the first chunk of every batch tile.
    @pl.when(ci == 0)
    def _():
        h_sc[...] = h0_ref[...]
        c_sc[...] = c0_ref[...]

    # ---- 1) whole-chunk input projection: big-M MXU pass, bias folded in once.
    #         Inputs arrive time-major so xg_sc is written time-major directly.
    xs2 = xs_ref[...].reshape(Tc * Bt, S).astype(mm_dtype)
    xa2 = xa_ref[...].reshape(Tc * Bt, A).astype(mm_dtype)
    # TODO(synk): merge the two small-K dots into one (Tc*Bt, S+A) dot once an
    # unaligned lane concat of the two slabs is guaranteed to lower everywhere.
    xg = (jnp.dot(xs2, ws_ref[...], preferred_element_type=jnp.float32)
          + jnp.dot(xa2, wa_ref[...], preferred_element_type=jnp.float32)
          + b_ref[...])                                     # (Tc*Bt, 4Hp) f32
    xg_sc[...] = xg.reshape(Tc, Bt, 4 * Hp)

    whh = whh_ref[...]                                      # hoisted out of the loop

    # ---- 2) recurrence: h/c live in vregs; one small MXU push per step plus
    #         dense time-major scratch accesses.  Gate order is (i, f, o, g):
    #         one contiguous sigmoid slab + one tanh slab, lane-aligned slices.
    def step(t, carry):
        h, c = carry
        gates = xg_sc[t] + jnp.dot(h.astype(mm_dtype), whh,
                                   preferred_element_type=jnp.float32)
        sig = jax.nn.sigmoid(gates[:, 0:3 * Hp])            # activations stay f32
        i_g = sig[:, 0 * Hp:1 * Hp]
        f_g = sig[:, 1 * Hp:2 * Hp]
        o_g = sig[:, 2 * Hp:3 * Hp]
        g_g = jnp.tanh(gates[:, 3 * Hp:4 * Hp])
        c_new = f_g * c + i_g * g_g
        h_new = o_g * jnp.tanh(c_new)
        hall_sc[t] = h_new                                  # dense (Bt, Hp) store
        return h_new, c_new

    unroll = True if Tc <= 16 else 8
    h_last, c_last = jax.lax.fori_loop(0, Tc, step, (h_sc[...], c_sc[...]),
                                       unroll=unroll)
    h_sc[...] = h_last
    c_sc[...] = c_last

    # ---- 3) fc head over the whole chunk: VPU mul + lane reduce, then a single
    #         small (Tc, Bt) -> (Bt, Tc) transpose for a lane-dense q writeback.
    fcw = fcw_ref[...].reshape(1, 1, Hp)
    q_tm = jnp.sum(hall_sc[...] * fcw, axis=-1) + fcb_ref[0, 0]     # (Tc, Bt)
    q_ref[...] = jnp.transpose(q_tm).astype(q_ref.dtype)            # (Bt, Tc)

    # NOTE: correct only because the time axis is the innermost, sequential
    # ("arbitrary") grid axis and hn/cn revisit the same output block per tile.
    @pl.when(ci == pl.num_programs(1) - 1)
    def _():
        hn_ref[...] = h_last.astype(hn_ref.dtype)
        cn_ref[...] = c_last.astype(cn_ref.dtype)


def _pick_t_chunk(T):
    # The recurrence is serial in T, so bigger chunks buy no throughput -- prefer
    # the smallest lane-dense chunk (keeps xg/hall scratch small, fits v7x's
    # 64 MiB VMEM, leaves headroom for input double-buffering); else one chunk.
    for c in (128, 256, 512):
        if T % c == 0:
            return c
    return T


def _num_tensorcores():
    try:
        info = pltpu.get_tpu_info()
        for name in ("num_cores", "num_tensorcores", "tensorcores_per_chip",
                     "core_count", "num_cores_per_chip"):
            v = getattr(info, name, None)
            if isinstance(v, int) and v > 0:
                return v
    except Exception:
        pass
    return 1


def _default_b_tile(B):
    # On a 2-TensorCore chip (v7x) split the batch tile so the "parallel" grid
    # axis shards across cores; on 1-TC chips (v5e/v6e) a split would only
    # serialize extra recurrence steps, so keep a single tile.
    if _num_tensorcores() >= 2 and B >= 16 and (B // 2) % 8 == 0:
        return B // 2
    return B


def _reorder_pad_gates(w, H, Hp):
    """PyTorch gate order (i, f, g, o) -> kernel order (i, f, o, g); each gate
    block zero-padded from H to Hp along the gate axis (axis 0).  Zero padding
    is exact: padded gate columns stay 0, padded h/c units stay 0."""
    i_b = w[0 * H:1 * H]
    f_b = w[1 * H:2 * H]
    g_b = w[2 * H:3 * H]
    o_b = w[3 * H:4 * H]
    pad = [(0, Hp - H)] + [(0, 0)] * (w.ndim - 1)
    return jnp.concatenate([jnp.pad(x, pad) for x in (i_b, f_b, o_b, g_b)],
                           axis=0)


@functools.partial(jax.jit,
                   static_argnames=("b_tile", "t_chunk", "compute_dtype"))
def recurrent_value_forward(state_seq, action_seq, hidden, params, *,
                            b_tile=None, t_chunk=None,
                            compute_dtype=jnp.bfloat16):
    """
    state_seq : (B, T, state_dim)   float32   (batch_first, like the PyTorch module)
    action_seq: (B, T, action_dim)  float32
    hidden    : (h0, c0), each (1, B, H)
    returns   : (q_seq (B, T, 1), (hn (1, B, H), cn (1, B, H)))
    """
    h0, c0 = hidden
    B, T, S = state_seq.shape
    A = action_seq.shape[-1]
    H = h0.shape[-1]
    Hp = ((H + 127) // 128) * 128            # lane-aligned hidden size (exact pad)

    if t_chunk is None:
        t_chunk = _pick_t_chunk(T)
    assert T % t_chunk == 0 and (t_chunk == T or t_chunk % 128 == 0)
    nc = T // t_chunk

    if b_tile is None:
        b_tile = _default_b_tile(B)
    assert B % b_tile == 0 and (b_tile == B or b_tile % 8 == 0)
    nb = B // b_tile

    # ---- weight prep (tiny tensors, fused by XLA under jit) ------------------
    # Gates reordered to (i, f, o, g) and zero-padded to Hp; W_ih split into its
    # state/action halves so the input sequences are never concatenated.
    wih_r = _reorder_pad_gates(params["w_ih"], H, Hp)                 # (4Hp, S+A)
    ws_t = wih_r[:, :S].T.astype(compute_dtype)                       # (S, 4Hp)
    wa_t = wih_r[:, S:].T.astype(compute_dtype)                       # (A, 4Hp)
    whh_p = jnp.pad(params["w_hh"], ((0, 0), (0, Hp - H)))            # (4H, Hp)
    whh_t = _reorder_pad_gates(whh_p, H, Hp).T.astype(compute_dtype)  # (Hp, 4Hp)
    bias = _reorder_pad_gates(params["b_ih"] + params["b_hh"], H, Hp)
    bias = bias.reshape(1, 4 * Hp).astype(jnp.float32)
    fcw = jnp.pad(params["fc_w"].reshape(1, H),
                  ((0, 0), (0, Hp - H))).astype(jnp.float32)          # (1, Hp)
    fcb = params["fc_b"].reshape(1, 1).astype(jnp.float32)

    # Time-major views of the sequences (layout plumbing only) + padded h0/c0.
    state_tm = jnp.transpose(state_seq, (1, 0, 2))                    # (T, B, S)
    action_tm = jnp.transpose(action_seq, (1, 0, 2))                  # (T, B, A)
    h0p = jnp.pad(h0[0], ((0, 0), (0, Hp - H)))                       # (B, Hp)
    c0p = jnp.pad(c0[0], ((0, 0), (0, Hp - H)))                       # (B, Hp)

    # ---- explicit VMEM budget + cost hint ------------------------------------
    wbytes = jnp.dtype(compute_dtype).itemsize
    vmem_need = (
        2 * b_tile * t_chunk * (S + A) * 4        # double-buffered input slabs
        + 2 * b_tile * t_chunk * 4                # double-buffered q tiles
        + b_tile * t_chunk * 4 * Hp * 4           # xg_sc scratch
        + b_tile * t_chunk * Hp * 4               # hall_sc scratch
        + 8 * b_tile * Hp * 4                     # h/c scratch + h0/c0 + hn/cn
        + (S + A + Hp) * 4 * Hp * wbytes          # weights
        + (4 * Hp + Hp) * 4)                      # biases + fc row
    vmem_limit = int(min(max(int(vmem_need * 1.5) + (1 << 20), 32 << 20),
                         120 << 20))
    cost = pl.CostEstimate(
        flops=2 * B * T * (S + A + Hp) * 4 * Hp + 2 * B * T * Hp,
        transcendentals=5 * B * T * Hp,
        bytes_accessed=4 * (B * T * (S + A + 1) + 4 * B * Hp
                            + (S + A + Hp + 1) * 4 * Hp + Hp + 1))

    grid_spec = pltpu.PrefetchScalarGridSpec(
        num_scalar_prefetch=0,
        grid=(nb, nc),
        in_specs=[
            pl.BlockSpec((t_chunk, b_tile, S), lambda bi, ci: (ci, bi, 0)),  # state (time-major)
            pl.BlockSpec((t_chunk, b_tile, A), lambda bi, ci: (ci, bi, 0)),  # action (time-major)
            pl.BlockSpec((S, 4 * Hp), lambda bi, ci: (0, 0)),                # W_ih^T (state half)
            pl.BlockSpec((A, 4 * Hp), lambda bi, ci: (0, 0)),                # W_ih^T (action half)
            pl.BlockSpec((Hp, 4 * Hp), lambda bi, ci: (0, 0)),               # W_hh^T
            pl.BlockSpec((1, 4 * Hp), lambda bi, ci: (0, 0)),                # combined LSTM bias
            pl.BlockSpec((1, Hp), lambda bi, ci: (0, 0)),                    # fc weight row
            pl.BlockSpec(memory_space=pltpu.MemorySpace.SMEM),               # fc bias scalar
            pl.BlockSpec((b_tile, Hp), lambda bi, ci: (bi, 0)),              # h0
            pl.BlockSpec((b_tile, Hp), lambda bi, ci: (bi, 0)),              # c0
        ],
        out_specs=[
            pl.BlockSpec((b_tile, t_chunk), lambda bi, ci: (bi, ci)),        # q (B, T), lane-dense
            pl.BlockSpec((b_tile, Hp), lambda bi, ci: (bi, 0)),              # hn
            pl.BlockSpec((b_tile, Hp), lambda bi, ci: (bi, 0)),              # cn
        ],
        scratch_shapes=[
            pltpu.VMEM((b_tile, Hp), jnp.float32),                  # running h (per tile)
            pltpu.VMEM((b_tile, Hp), jnp.float32),                  # running c (per tile)
            pltpu.VMEM((t_chunk, b_tile, 4 * Hp), jnp.float32),     # chunk x-projection (time-major)
            pltpu.VMEM((t_chunk, b_tile, Hp), jnp.float32),         # chunk hidden states (time-major)
        ],
    )

    q_bt, hn, cn = pl.pallas_call(
        _lstm_value_kernel,
        out_shape=(
            jax.ShapeDtypeStruct((B, T), jnp.float32),
            jax.ShapeDtypeStruct((B, Hp), jnp.float32),
            jax.ShapeDtypeStruct((B, Hp), jnp.float32),
        ),
        grid_spec=grid_spec,
        compiler_params=pltpu.CompilerParams(
            dimension_semantics=("parallel", "arbitrary"),   # batch || , time sequential
            vmem_limit_bytes=vmem_limit),
        cost_estimate=cost,
    )(state_tm, action_tm, ws_t, wa_t, whh_t, bias, fcw, fcb, h0p, c0p)

    return q_bt[..., None], (hn[:, :H][None], cn[:, :H][None])


def _init_params(key, state_dim, action_dim, hidden_dim):
    """Deterministic init matching PyTorch shapes (uniform +-1/sqrt(H))."""
    D = state_dim + action_dim
    H = hidden_dim
    k = 1.0 / jnp.sqrt(jnp.float32(H))
    keys = jax.random.split(key, 6)
    u = lambda kk, shape: jax.random.uniform(kk, shape, jnp.float32, -k, k)
    return {
        "w_ih": u(keys[0], (4 * H, D)),
        "w_hh": u(keys[1], (4 * H, H)),
        "b_ih": u(keys[2], (4 * H,)),
        "b_hh": u(keys[3], (4 * H,)),
        "fc_w": u(keys[4], (1, H)),
        "fc_b": u(keys[5], (1,)),
    }


def _reference_forward(state_seq, action_seq, hidden, params):
    """Pure-JAX reference (PyTorch LSTM semantics) for validation."""
    h0, c0 = hidden
    sa = jnp.concatenate([state_seq, action_seq], axis=-1)     # (B, T, D)
    x_tbd = jnp.transpose(sa, (1, 0, 2))                       # (T, B, D)
    H = h0.shape[-1]
    wih_t, whh_t = params["w_ih"].T, params["w_hh"].T
    b = params["b_ih"] + params["b_hh"]

    def step(carry, x):
        h, c = carry
        g = x @ wih_t + h @ whh_t + b
        i = jax.nn.sigmoid(g[:, 0 * H:1 * H])
        f = jax.nn.sigmoid(g[:, 1 * H:2 * H])
        gg = jnp.tanh(g[:, 2 * H:3 * H])
        o = jax.nn.sigmoid(g[:, 3 * H:4 * H])
        c_new = f * c + i * gg
        h_new = o * jnp.tanh(c_new)
        return (h_new, c_new), h_new

    (hn, cn), outs = jax.lax.scan(step, (h0[0], c0[0]), x_tbd)
    q = outs @ params["fc_w"].T + params["fc_b"]               # (T, B, 1)
    return jnp.transpose(q, (1, 0, 2)), (hn[None], cn[None])


if __name__ == "__main__":
    B, T, STATE_DIM, ACTION_DIM, HIDDEN = 2, 8, 8, 4, 32

    key = jax.random.PRNGKey(0)
    k_params, k_s, k_a, k_h, k_c = jax.random.split(key, 5)
    params = _init_params(k_params, STATE_DIM, ACTION_DIM, HIDDEN)

    state_seq = jax.random.normal(k_s, (B, T, STATE_DIM), jnp.float32)
    action_seq = jax.random.normal(k_a, (B, T, ACTION_DIM), jnp.float32)
    h0 = 0.1 * jax.random.normal(k_h, (1, B, HIDDEN), jnp.float32)
    c0 = 0.1 * jax.random.normal(k_c, (1, B, HIDDEN), jnp.float32)

    q_ref, (hn_ref, cn_ref) = _reference_forward(state_seq, action_seq, (h0, c0), params)

    # f32 matmul path: tight check against the pure-JAX reference.
    q32, (hn32, cn32) = recurrent_value_forward(
        state_seq, action_seq, (h0, c0), params, compute_dtype=jnp.float32)
    jax.block_until_ready((q32, hn32, cn32))
    assert q32.shape == (B, T, 1)
    assert hn32.shape == (1, B, HIDDEN) and cn32.shape == (1, B, HIDDEN)
    assert jnp.allclose(q32, q_ref, atol=1e-4)
    assert jnp.allclose(hn32, hn_ref, atol=1e-4)
    assert jnp.allclose(cn32, cn_ref, atol=1e-4)

    # Default (bf16 matmul operands, f32 accumulation + f32 gate math) path:
    # looser tolerance due to bf16 weight/operand rounding over the recurrence.
    q_seq, (hn, cn) = recurrent_value_forward(state_seq, action_seq, (h0, c0), params)
    jax.block_until_ready((q_seq, hn, cn))
    assert q_seq.shape == (B, T, 1)
    assert jnp.allclose(q_seq, q_ref, atol=5e-2)
    assert jnp.allclose(hn, hn_ref, atol=5e-2)
    assert jnp.allclose(cn, cn_ref, atol=5e-2)

    print("KERNEL_OK")
</pallas_src>

<mosaic_0001>
module attributes {stable_mosaic.version = 11 : i64} {
  func.func @_lstm_value_kernel(%arg0: i32, %arg1: i32, %arg2: memref<8x2x8xf32, #tpu.memory_space<vmem>>, %arg3: memref<8x2x4xf32, #tpu.memory_space<vmem>>, %arg4: memref<8x512xf32, #tpu.memory_space<vmem>>, %arg5: memref<4x512xf32, #tpu.memory_space<vmem>>, %arg6: memref<128x512xf32, #tpu.memory_space<vmem>>, %arg7: memref<1x512xf32, #tpu.memory_space<vmem>>, %arg8: memref<1x128xf32, #tpu.memory_space<vmem>>, %arg9: memref<1x1xf32, #tpu.memory_space<smem>>, %arg10: memref<2x128xf32, #tpu.memory_space<vmem>>, %arg11: memref<2x128xf32, #tpu.memory_space<vmem>>, %arg12: memref<2x8xf32, #tpu.memory_space<vmem>>, %arg13: memref<2x128xf32, #tpu.memory_space<vmem>>, %arg14: memref<2x128xf32, #tpu.memory_space<vmem>>, %arg15: memref<2x128xf32, #tpu.memory_space<vmem>>, %arg16: memref<2x128xf32, #tpu.memory_space<vmem>>, %arg17: memref<8x2x512xf32, #tpu.memory_space<vmem>>, %arg18: memref<8x2x128xf32, #tpu.memory_space<vmem>>) attributes {dimension_semantics = [#tpu.dimension_semantics<parallel>, #tpu.dimension_semantics<arbitrary>], iteration_bounds = array<i64: 1, 1>, scalar_prefetch = 0 : i64, scratch_operands = 4 : i64, tpu.core_type = #tpu.core_type<tc>, window_params = [{transform_indices = @transform_0, window_bounds = array<i64: 8, 2, 8>}, {transform_indices = @transform_1, window_bounds = array<i64: 8, 2, 4>}, {pipeline_mode = #tpu.pipeline_mode<synchronous>, transform_indices = @transform_2, window_bounds = array<i64: 8, 512>}, {pipeline_mode = #tpu.pipeline_mode<synchronous>, transform_indices = @transform_3, window_bounds = array<i64: 4, 512>}, {pipeline_mode = #tpu.pipeline_mode<synchronous>, transform_indices = @transform_4, window_bounds = array<i64: 128, 512>}, {pipeline_mode = #tpu.pipeline_mode<synchronous>, transform_indices = @transform_5, window_bounds = array<i64: 1, 512>}, {pipeline_mode = #tpu.pipeline_mode<synchronous>, transform_indices = @transform_6, window_bounds = array<i64: 1, 128>}, {transform_indices = @transform_7, window_bounds = array<i64: 1, 1>}, {transform_indices = @transform_8, window_bounds = array<i64: 2, 128>}, {transform_indices = @transform_9, window_bounds = array<i64: 2, 128>}, {transform_indices = @transform_10, window_bounds = array<i64: 2, 8>}, {transform_indices = @transform_11, window_bounds = array<i64: 2, 128>}, {transform_indices = @transform_12, window_bounds = array<i64: 2, 128>}]} {
    %c0_i32 = arith.constant 0 : i32
    %0 = arith.cmpi eq, %arg1, %c0_i32 : i32
    %1 = arith.extui %0 : i1 to i32
    %c0_i32_0 = arith.constant 0 : i32
    %2 = arith.cmpi ne, %1, %c0_i32_0 : i32
    scf.if %2 {
      %c0_87 = arith.constant 0 : index
      %c0_88 = arith.constant 0 : index
      %236 = vector.load %arg10[%c0_87, %c0_88] : memref<2x128xf32, #tpu.memory_space<vmem>>, vector<2x128xf32>
      %c0_89 = arith.constant 0 : index
      %c0_90 = arith.constant 0 : index
      %237 = vector.load %arg15[%c0_89, %c0_90] : memref<2x128xf32, #tpu.memory_space<vmem>>, vector<2x128xf32>
      tpu.vector_store %arg15[%c0_89, %c0_90], %236 {strides = array<i32>} : memref<2x128xf32, #tpu.memory_space<vmem>>, vector<2x128xf32>,
      %c0_91 = arith.constant 0 : index
      %c0_92 = arith.constant 0 : index
      %238 = vector.load %arg11[%c0_91, %c0_92] : memref<2x128xf32, #tpu.memory_space<vmem>>, vector<2x128xf32>
      %c0_93 = arith.constant 0 : index
      %c0_94 = arith.constant 0 : index
      %239 = vector.load %arg16[%c0_93, %c0_94] : memref<2x128xf32, #tpu.memory_space<vmem>>, vector<2x128xf32>
      tpu.vector_store %arg16[%c0_93, %c0_94], %238 {strides = array<i32>} : memref<2x128xf32, #tpu.memory_space<vmem>>, vector<2x128xf32>,
    } else {
    }
    %c0 = arith.constant 0 : index
    %c0_1 = arith.constant 0 : index
    %c0_2 = arith.constant 0 : index
    %3 = vector.load %arg2[%c0, %c0_1, %c0_2] : memref<8x2x8xf32, #tpu.memory_space<vmem>>, vector<8x2x8xf32>
    %4 = vector.shape_cast %3 : vector<8x2x8xf32> to vector<16x8xf32>
    %c0_3 = arith.constant 0 : index
    %c0_4 = arith.constant 0 : index
    %c0_5 = arith.constant 0 : index
    %5 = vector.load %arg3[%c0_3, %c0_4, %c0_5] : memref<8x2x4xf32, #tpu.memory_space<vmem>>, vector<8x2x4xf32>
    %6 = vector.shape_cast %5 : vector<8x2x4xf32> to vector<16x4xf32>
    %c0_6 = arith.constant 0 : index
    %c0_7 = arith.constant 0 : index
    %7 = vector.load %arg4[%c0_6, %c0_7] : memref<8x512xf32, #tpu.memory_space<vmem>>, vector<8x512xf32>
    %cst = arith.constant dense<0.000000e+00> : vector<16x512xf32>
    %8 = tpu.matmul %4, %7, %cst {dimension_numbers = #tpu.dot_dimension_numbers<[1], [0], [0], [1], [0, 0, 1, 1], [], []>} : vector<16x8xf32>, vector<8x512xf32>, vector<16x512xf32> -> vector<16x512xf32>
    %c0_8 = arith.constant 0 : index
    %c0_9 = arith.constant 0 : index
    %9 = vector.load %arg5[%c0_8, %c0_9] : memref<4x512xf32, #tpu.memory_space<vmem>>, vector<4x512xf32>
    %cst_10 = arith.constant dense<0.000000e+00> : vector<16x512xf32>
    %10 = tpu.matmul %6, %9, %cst_10 {dimension_numbers = #tpu.dot_dimension_numbers<[1], [0], [0], [1], [0, 0, 1, 1], [], []>} : vector<16x4xf32>, vector<4x512xf32>, vector<16x512xf32> -> vector<16x512xf32>
    %11 = arith.addf %8, %10 : vector<16x512xf32>
    %c0_11 = arith.constant 0 : index
    %c0_12 = arith.constant 0 : index
    %12 = vector.load %arg7[%c0_11, %c0_12] : memref<1x512xf32, #tpu.memory_space<vmem>>, vector<1x512xf32>
    %13 = vector.broadcast %12 : vector<1x512xf32> to vector<16x512xf32>
    %14 = arith.addf %11, %13 : vector<16x512xf32>
    %15 = vector.shape_cast %14 : vector<16x512xf32> to vector<8x2x512xf32>
    %c0_13 = arith.constant 0 : index
    %c0_14 = arith.constant 0 : index
    %c0_15 = arith.constant 0 : index
    %16 = vector.load %arg17[%c0_13, %c0_14, %c0_15] : memref<8x2x512xf32, #tpu.memory_space<vmem>>, vector<8x2x512xf32>
    tpu.vector_store %arg17[%c0_13, %c0_14, %c0_15], %15 {strides = array<i32>} : memref<8x2x512xf32, #tpu.memory_space<vmem>>, vector<8x2x512xf32>,
    %c0_16 = arith.constant 0 : index
    %c0_17 = arith.constant 0 : index
    %17 = vector.load %arg6[%c0_16, %c0_17] : memref<128x512xf32, #tpu.memory_space<vmem>>, vector<128x512xf32>
    %c0_18 = arith.constant 0 : index
    %c0_19 = arith.constant 0 : index
    %18 = vector.load %arg15[%c0_18, %c0_19] : memref<2x128xf32, #tpu.memory_space<vmem>>, vector<2x128xf32>
    %c0_20 = arith.constant 0 : index
    %c0_21 = arith.constant 0 : index
    %19 = vector.load %arg16[%c0_20, %c0_21] : memref<2x128xf32, #tpu.memory_space<vmem>>, vector<2x128xf32>
    %c0_i32_22 = arith.constant 0 : i32
    %20 = arith.index_cast %c0_i32_22 : i32 to index
    %c0_23 = arith.constant 0 : index
    %c0_24 = arith.constant 0 : index
    %21 = vector.load %arg17[%20, %c0_23, %c0_24] : memref<8x2x512xf32, #tpu.memory_space<vmem>>, vector<1x2x512xf32>
    %22 = vector.shape_cast %21 : vector<1x2x512xf32> to vector<2x512xf32>
    %cst_25 = arith.constant dense<0.000000e+00> : vector<2x512xf32>
    %23 = tpu.matmul %18, %17, %cst_25 {dimension_numbers = #tpu.dot_dimension_numbers<[1], [0], [0], [1], [0, 0, 1, 1], [], []>} : vector<2x128xf32>, vector<128x512xf32>, vector<2x512xf32> -> vector<2x512xf32>
    %24 = arith.addf %22, %23 : vector<2x512xf32>
    %25 = vector.extract_strided_slice %24 {offsets = [0, 0], sizes = [2, 384], strides = [1, 1]} : vector<2x512xf32> to vector<2x384xf32>
    %26 = arith.negf %25 : vector<2x384xf32>
    %27 = math.exp %26 : vector<2x384xf32>
    %cst_26 = arith.constant 1.000000e+00 : f32
    %28 = vector.broadcast %cst_26 : f32 to vector<2x384xf32>
    %29 = arith.addf %28, %27 : vector<2x384xf32>
    %30 = arith.divf %28, %29 : vector<2x384xf32>
    %31 = vector.extract_strided_slice %30 {offsets = [0, 0], sizes = [2, 128], strides = [1, 1]} : vector<2x384xf32> to vector<2x128xf32>
    %32 = vector.extract_strided_slice %30 {offsets = [0, 128], sizes = [2, 128], strides = [1, 1]} : vector<2x384xf32> to vector<2x128xf32>
    %33 = vector.extract_strided_slice %30 {offsets = [0, 256], sizes = [2, 128], strides = [1, 1]} : vector<2x384xf32> to vector<2x128xf32>
    %34 = vector.extract_strided_slice %24 {offsets = [0, 384], sizes = [2, 128], strides = [1, 1]} : vector<2x512xf32> to vector<2x128xf32>
    %35 = math.tanh %34 : vector<2x128xf32>
    %36 = arith.mulf %32, %19 : vector<2x128xf32>
    %37 = arith.mulf %31, %35 : vector<2x128xf32>
    %38 = arith.addf %36, %37 : vector<2x128xf32>
    %39 = math.tanh %38 : vector<2x128xf32>
    %40 = arith.mulf %33, %39 : vector<2x128xf32>
    %41 = arith.index_cast %c0_i32_22 : i32 to index
    %c0_27 = arith.constant 0 : index
    %c0_28 = arith.constant 0 : index
    %42 = vector.load %arg18[%41, %c0_27, %c0_28] : memref<8x2x128xf32, #tpu.memory_space<vmem>>, vector<1x2x128xf32>
    %43 = vector.shape_cast %42 : vector<1x2x128xf32> to vector<2x128xf32>
    %44 = vector.shape_cast %40 : vector<2x128xf32> to vector<1x2x128xf32>
    tpu.vector_store %arg18[%41, %c0_27, %c0_28], %44 {strides = array<i32>} : memref<8x2x128xf32, #tpu.memory_space<vmem>>, vector<1x2x128xf32>,
    %c1_i32 = arith.constant 1 : i32
    %45 = arith.index_cast %c1_i32 : i32 to index
    %c0_29 = arith.constant 0 : index
    %c0_30 = arith.constant 0 : index
    %46 = vector.load %arg17[%45, %c0_29, %c0_30] : memref<8x2x512xf32, #tpu.memory_space<vmem>>, vector<1x2x512xf32>
    %47 = vector.shape_cast %46 : vector<1x2x512xf32> to vector<2x512xf32>
    %cst_31 = arith.constant dense<0.000000e+00> : vector<2x512xf32>
    %48 = tpu.matmul %40, %17, %cst_31 {dimension_numbers = #tpu.dot_dimension_numbers<[1], [0], [0], [1], [0, 0, 1, 1], [], []>} : vector<2x128xf32>, vector<128x512xf32>, vector<2x512xf32> -> vector<2x512xf32>
    %49 = arith.addf %47, %48 : vector<2x512xf32>
    %50 = vector.extract_strided_slice %49 {offsets = [0, 0], sizes = [2, 384], strides = [1, 1]} : vector<2x512xf32> to vector<2x384xf32>
    %51 = arith.negf %50 : vector<2x384xf32>
    %52 = math.exp %51 : vector<2x384xf32>
    %cst_32 = arith.constant 1.000000e+00 : f32
    %53 = vector.broadcast %cst_32 : f32 to vector<2x384xf32>
    %54 = arith.addf %53, %52 : vector<2x384xf32>
    %55 = arith.divf %53, %54 : vector<2x384xf32>
    %56 = vector.extract_strided_slice %55 {offsets = [0, 0], sizes = [2, 128], strides = [1, 1]} : vector<2x384xf32> to vector<2x128xf32>
    %57 = vector.extract_strided_slice %55 {offsets = [0, 128], sizes = [2, 128], strides = [1, 1]} : vector<2x384xf32> to vector<2x128xf32>
    %58 = vector.extract_strided_slice %55 {offsets = [0, 256], sizes = [2, 128], strides = [1, 1]} : vector<2x384xf32> to vector<2x128xf32>
    %59 = vector.extract_strided_slice %49 {offsets = [0, 384], sizes = [2, 128], strides = [1, 1]} : vector<2x512xf32> to vector<2x128xf32>
    %60 = math.tanh %59 : vector<2x128xf32>
    %61 = arith.mulf %57, %38 : vector<2x128xf32>
    %62 = arith.mulf %56, %60 : vector<2x128xf32>
    %63 = arith.addf %61, %62 : vector<2x128xf32>
    %64 = math.tanh %63 : vector<2x128xf32>
    %65 = arith.mulf %58, %64 : vector<2x128xf32>
    %66 = arith.index_cast %c1_i32 : i32 to index
    %c0_33 = arith.constant 0 : index
    %c0_34 = arith.constant 0 : index
    %67 = vector.load %arg18[%66, %c0_33, %c0_34] : memref<8x2x128xf32, #tpu.memory_space<vmem>>, vector<1x2x128xf32>
    %68 = vector.shape_cast %67 : vector<1x2x128xf32> to vector<2x128xf32>
    %69 = vector.shape_cast %65 : vector<2x128xf32> to vector<1x2x128xf32>
    tpu.vector_store %arg18[%66, %c0_33, %c0_34], %69 {strides = array<i32>} : memref<8x2x128xf32, #tpu.memory_space<vmem>>, vector<1x2x128xf32>,
    %c2_i32 = arith.constant 2 : i32
    %70 = arith.index_cast %c2_i32 : i32 to index
    %c0_35 = arith.constant 0 : index
    %c0_36 = arith.constant 0 : index
    %71 = vector.load %arg17[%70, %c0_35, %c0_36] : memref<8x2x512xf32, #tpu.memory_space<vmem>>, vector<1x2x512xf32>
    %72 = vector.shape_cast %71 : vector<1x2x512xf32> to vector<2x512xf32>
    %cst_37 = arith.constant dense<0.000000e+00> : vector<2x512xf32>
    %73 = tpu.matmul %65, %17, %cst_37 {dimension_numbers = #tpu.dot_dimension_numbers<[1], [0], [0], [1], [0, 0, 1, 1], [], []>} : vector<2x128xf32>, vector<128x512xf32>, vector<2x512xf32> -> vector<2x512xf32>
    %74 = arith.addf %72, %73 : vector<2x512xf32>
    %75 = vector.extract_strided_slice %74 {offsets = [0, 0], sizes = [2, 384], strides = [1, 1]} : vector<2x512xf32> to vector<2x384xf32>
    %76 = arith.negf %75 : vector<2x384xf32>
    %77 = math.exp %76 : vector<2x384xf32>
    %cst_38 = arith.constant 1.000000e+00 : f32
    %78 = vector.broadcast %cst_38 : f32 to vector<2x384xf32>
    %79 = arith.addf %78, %77 : vector<2x384xf32>
    %80 = arith.divf %78, %79 : vector<2x384xf32>
    %81 = vector.extract_strided_slice %80 {offsets = [0, 0], sizes = [2, 128], strides = [1, 1]} : vector<2x384xf32> to vector<2x128xf32>
    %82 = vector.extract_strided_slice %80 {offsets = [0, 128], sizes = [2, 128], strides = [1, 1]} : vector<2x384xf32> to vector<2x128xf32>
    %83 = vector.extract_strided_slice %80 {offsets = [0, 256], sizes = [2, 128], strides = [1, 1]} : vector<2x384xf32> to vector<2x128xf32>
    %84 = vector.extract_strided_slice %74 {offsets = [0, 384], sizes = [2, 128], strides = [1, 1]} : vector<2x512xf32> to vector<2x128xf32>
    %85 = math.tanh %84 : vector<2x128xf32>
    %86 = arith.mulf %82, %63 : vector<2x128xf32>
    %87 = arith.mulf %81, %85 : vector<2x128xf32>
    %88 = arith.addf %86, %87 : vector<2x128xf32>
    %89 = math.tanh %88 : vector<2x128xf32>
    %90 = arith.mulf %83, %89 : vector<2x128xf32>
    %91 = arith.index_cast %c2_i32 : i32 to index
    %c0_39 = arith.constant 0 : index
    %c0_40 = arith.constant 0 : index
    %92 = vector.load %arg18[%91, %c0_39, %c0_40] : memref<8x2x128xf32, #tpu.memory_space<vmem>>, vector<1x2x128xf32>
    %93 = vector.shape_cast %92 : vector<1x2x128xf32> to vector<2x128xf32>
    %94 = vector.shape_cast %90 : vector<2x128xf32> to vector<1x2x128xf32>
    tpu.vector_store %arg18[%91, %c0_39, %c0_40], %94 {strides = array<i32>} : memref<8x2x128xf32, #tpu.memory_space<vmem>>, vector<1x2x128xf32>,
    %c3_i32 = arith.constant 3 : i32
    %95 = arith.index_cast %c3_i32 : i32 to index
    %c0_41 = arith.constant 0 : index
    %c0_42 = arith.constant 0 : index
    %96 = vector.load %arg17[%95, %c0_41, %c0_42] : memref<8x2x512xf32, #tpu.memory_space<vmem>>, vector<1x2x512xf32>
    %97 = vector.shape_cast %96 : vector<1x2x512xf32> to vector<2x512xf32>
    %cst_43 = arith.constant dense<0.000000e+00> : vector<2x512xf32>
    %98 = tpu.matmul %90, %17, %cst_43 {dimension_numbers = #tpu.dot_dimension_numbers<[1], [0], [0], [1], [0, 0, 1, 1], [], []>} : vector<2x128xf32>, vector<128x512xf32>, vector<2x512xf32> -> vector<2x512xf32>
    %99 = arith.addf %97, %98 : vector<2x512xf32>
    %100 = vector.extract_strided_slice %99 {offsets = [0, 0], sizes = [2, 384], strides = [1, 1]} : vector<2x512xf32> to vector<2x384xf32>
    %101 = arith.negf %100 : vector<2x384xf32>
    %102 = math.exp %101 : vector<2x384xf32>
    %cst_44 = arith.constant 1.000000e+00 : f32
    %103 = vector.broadcast %cst_44 : f32 to vector<2x384xf32>
    %104 = arith.addf %103, %102 : vector<2x384xf32>
    %105 = arith.divf %103, %104 : vector<2x384xf32>
    %106 = vector.extract_strided_slice %105 {offsets = [0, 0], sizes = [2, 128], strides = [1, 1]} : vector<2x384xf32> to vector<2x128xf32>
    %107 = vector.extract_strided_slice %105 {offsets = [0, 128], sizes = [2, 128], strides = [1, 1]} : vector<2x384xf32> to vector<2x128xf32>
    %108 = vector.extract_strided_slice %105 {offsets = [0, 256], sizes = [2, 128], strides = [1, 1]} : vector<2x384xf32> to vector<2x128xf32>
    %109 = vector.extract_strided_slice %99 {offsets = [0, 384], sizes = [2, 128], strides = [1, 1]} : vector<2x512xf32> to vector<2x128xf32>
    %110 = math.tanh %109 : vector<2x128xf32>
    %111 = arith.mulf %107, %88 : vector<2x128xf32>
    %112 = arith.mulf %106, %110 : vector<2x128xf32>
    %113 = arith.addf %111, %112 : vector<2x128xf32>
    %114 = math.tanh %113 : vector<2x128xf32>
    %115 = arith.mulf %108, %114 : vector<2x128xf32>
    %116 = arith.index_cast %c3_i32 : i32 to index
    %c0_45 = arith.constant 0 : index
    %c0_46 = arith.constant 0 : index
    %117 = vector.load %arg18[%116, %c0_45, %c0_46] : memref<8x2x128xf32, #tpu.memory_space<vmem>>, vector<1x2x128xf32>
    %118 = vector.shape_cast %117 : vector<1x2x128xf32> to vector<2x128xf32>
    %119 = vector.shape_cast %115 : vector<2x128xf32> to vector<1x2x128xf32>
    tpu.vector_store %arg18[%116, %c0_45, %c0_46], %119 {strides = array<i32>} : memref<8x2x128xf32, #tpu.memory_space<vmem>>, vector<1x2x128xf32>,
    %c4_i32 = arith.constant 4 : i32
    %120 = arith.index_cast %c4_i32 : i32 to index
    %c0_47 = arith.constant 0 : index
    %c0_48 = arith.constant 0 : index
    %121 = vector.load %arg17[%120, %c0_47, %c0_48] : memref<8x2x512xf32, #tpu.memory_space<vmem>>, vector<1x2x512xf32>
    %122 = vector.shape_cast %121 : vector<1x2x512xf32> to vector<2x512xf32>
    %cst_49 = arith.constant dense<0.000000e+00> : vector<2x512xf32>
    %123 = tpu.matmul %115, %17, %cst_49 {dimension_numbers = #tpu.dot_dimension_numbers<[1], [0], [0], [1], [0, 0, 1, 1], [], []>} : vector<2x128xf32>, vector<128x512xf32>, vector<2x512xf32> -> vector<2x512xf32>
    %124 = arith.addf %122, %123 : vector<2x512xf32>
    %125 = vector.extract_strided_slice %124 {offsets = [0, 0], sizes = [2, 384], strides = [1, 1]} : vector<2x512xf32> to vector<2x384xf32>
    %126 = arith.negf %125 : vector<2x384xf32>
    %127 = math.exp %126 : vector<2x384xf32>
    %cst_50 = arith.constant 1.000000e+00 : f32
    %128 = vector.broadcast %cst_50 : f32 to vector<2x384xf32>
    %129 = arith.addf %128, %127 : vector<2x384xf32>
    %130 = arith.divf %128, %129 : vector<2x384xf32>
    %131 = vector.extract_strided_slice %130 {offsets = [0, 0], sizes = [2, 128], strides = [1, 1]} : vector<2x384xf32> to vector<2x128xf32>
    %132 = vector.extract_strided_slice %130 {offsets = [0, 128], sizes = [2, 128], strides = [1, 1]} : vector<2x384xf32> to vector<2x128xf32>
    %133 = vector.extract_strided_slice %130 {offsets = [0, 256], sizes = [2, 128], strides = [1, 1]} : vector<2x384xf32> to vector<2x128xf32>
    %134 = vector.extract_strided_slice %124 {offsets = [0, 384], sizes = [2, 128], strides = [1, 1]} : vector<2x512xf32> to vector<2x128xf32>
    %135 = math.tanh %134 : vector<2x128xf32>
    %136 = arith.mulf %132, %113 : vector<2x128xf32>
    %137 = arith.mulf %131, %135 : vector<2x128xf32>
    %138 = arith.addf %136, %137 : vector<2x128xf32>
    %139 = math.tanh %138 : vector<2x128xf32>
    %140 = arith.mulf %133, %139 : vector<2x128xf32>
    %141 = arith.index_cast %c4_i32 : i32 to index
    %c0_51 = arith.constant 0 : index
    %c0_52 = arith.constant 0 : index
    %142 = vector.load %arg18[%141, %c0_51, %c0_52] : memref<8x2x128xf32, #tpu.memory_space<vmem>>, vector<1x2x128xf32>
    %143 = vector.shape_cast %142 : vector<1x2x128xf32> to vector<2x128xf32>
    %144 = vector.shape_cast %140 : vector<2x128xf32> to vector<1x2x128xf32>
    tpu.vector_store %arg18[%141, %c0_51, %c0_52], %144 {strides = array<i32>} : memref<8x2x128xf32, #tpu.memory_space<vmem>>, vector<1x2x128xf32>,
    %c5_i32 = arith.constant 5 : i32
    %145 = arith.index_cast %c5_i32 : i32 to index
    %c0_53 = arith.constant 0 : index
    %c0_54 = arith.constant 0 : index
    %146 = vector.load %arg17[%145, %c0_53, %c0_54] : memref<8x2x512xf32, #tpu.memory_space<vmem>>, vector<1x2x512xf32>
    %147 = vector.shape_cast %146 : vector<1x2x512xf32> to vector<2x512xf32>
    %cst_55 = arith.constant dense<0.000000e+00> : vector<2x512xf32>
    %148 = tpu.matmul %140, %17, %cst_55 {dimension_numbers = #tpu.dot_dimension_numbers<[1], [0], [0], [1], [0, 0, 1, 1], [], []>} : vector<2x128xf32>, vector<128x512xf32>, vector<2x512xf32> -> vector<2x512xf32>
    %149 = arith.addf %147, %148 : vector<2x512xf32>
    %150 = vector.extract_strided_slice %149 {offsets = [0, 0], sizes = [2, 384], strides = [1, 1]} : vector<2x512xf32> to vector<2x384xf32>
    %151 = arith.negf %150 : vector<2x384xf32>
    %152 = math.exp %151 : vector<2x384xf32>
    %cst_56 = arith.constant 1.000000e+00 : f32
    %153 = vector.broadcast %cst_56 : f32 to vector<2x384xf32>
    %154 = arith.addf %153, %152 : vector<2x384xf32>
    %155 = arith.divf %153, %154 : vector<2x384xf32>
    %156 = vector.extract_strided_slice %155 {offsets = [0, 0], sizes = [2, 128], strides = [1, 1]} : vector<2x384xf32> to vector<2x128xf32>
    %157 = vector.extract_strided_slice %155 {offsets = [0, 128], sizes = [2, 128], strides = [1, 1]} : vector<2x384xf32> to vector<2x128xf32>
    %158 = vector.extract_strided_slice %155 {offsets = [0, 256], sizes = [2, 128], strides = [1, 1]} : vector<2x384xf32> to vector<2x128xf32>
    %159 = vector.extract_strided_slice %149 {offsets = [0, 384], sizes = [2, 128], strides = [1, 1]} : vector<2x512xf32> to vector<2x128xf32>
    %160 = math.tanh %159 : vector<2x128xf32>
    %161 = arith.mulf %157, %138 : vector<2x128xf32>
    %162 = arith.mulf %156, %160 : vector<2x128xf32>
    %163 = arith.addf %161, %162 : vector<2x128xf32>
    %164 = math.tanh %163 : vector<2x128xf32>
    %165 = arith.mulf %158, %164 : vector<2x128xf32>
    %166 = arith.index_cast %c5_i32 : i32 to index
    %c0_57 = arith.constant 0 : index
    %c0_58 = arith.constant 0 : index
    %167 = vector.load %arg18[%166, %c0_57, %c0_58] : memref<8x2x128xf32, #tpu.memory_space<vmem>>, vector<1x2x128xf32>
    %168 = vector.shape_cast %167 : vector<1x2x128xf32> to vector<2x128xf32>
    %169 = vector.shape_cast %165 : vector<2x128xf32> to vector<1x2x128xf32>
    tpu.vector_store %arg18[%166, %c0_57, %c0_58], %169 {strides = array<i32>} : memref<8x2x128xf32, #tpu.memory_space<vmem>>, vector<1x2x128xf32>,
    %c6_i32 = arith.constant 6 : i32
    %170 = arith.index_cast %c6_i32 : i32 to index
    %c0_59 = arith.constant 0 : index
    %c0_60 = arith.constant 0 : index
    %171 = vector.load %arg17[%170, %c0_59, %c0_60] : memref<8x2x512xf32, #tpu.memory_space<vmem>>, vector<1x2x512xf32>
    %172 = vector.shape_cast %171 : vector<1x2x512xf32> to vector<2x512xf32>
    %cst_61 = arith.constant dense<0.000000e+00> : vector<2x512xf32>
    %173 = tpu.matmul %165, %17, %cst_61 {dimension_numbers = #tpu.dot_dimension_numbers<[1], [0], [0], [1], [0, 0, 1, 1], [], []>} : vector<2x128xf32>, vector<128x512xf32>, vector<2x512xf32> -> vector<2x512xf32>
    %174 = arith.addf %172, %173 : vector<2x512xf32>
    %175 = vector.extract_strided_slice %174 {offsets = [0, 0], sizes = [2, 384], strides = [1, 1]} : vector<2x512xf32> to vector<2x384xf32>
    %176 = arith.negf %175 : vector<2x384xf32>
    %177 = math.exp %176 : vector<2x384xf32>
    %cst_62 = arith.constant 1.000000e+00 : f32
    %178 = vector.broadcast %cst_62 : f32 to vector<2x384xf32>
    %179 = arith.addf %178, %177 : vector<2x384xf32>
    %180 = arith.divf %178, %179 : vector<2x384xf32>
    %181 = vector.extract_strided_slice %180 {offsets = [0, 0], sizes = [2, 128], strides = [1, 1]} : vector<2x384xf32> to vector<2x128xf32>
    %182 = vector.extract_strided_slice %180 {offsets = [0, 128], sizes = [2, 128], strides = [1, 1]} : vector<2x384xf32> to vector<2x128xf32>
    %183 = vector.extract_strided_slice %180 {offsets = [0, 256], sizes = [2, 128], strides = [1, 1]} : vector<2x384xf32> to vector<2x128xf32>
    %184 = vector.extract_strided_slice %174 {offsets = [0, 384], sizes = [2, 128], strides = [1, 1]} : vector<2x512xf32> to vector<2x128xf32>
    %185 = math.tanh %184 : vector<2x128xf32>
    %186 = arith.mulf %182, %163 : vector<2x128xf32>
    %187 = arith.mulf %181, %185 : vector<2x128xf32>
    %188 = arith.addf %186, %187 : vector<2x128xf32>
    %189 = math.tanh %188 : vector<2x128xf32>
    %190 = arith.mulf %183, %189 : vector<2x128xf32>
    %191 = arith.index_cast %c6_i32 : i32 to index
    %c0_63 = arith.constant 0 : index
    %c0_64 = arith.constant 0 : index
    %192 = vector.load %arg18[%191, %c0_63, %c0_64] : memref<8x2x128xf32, #tpu.memory_space<vmem>>, vector<1x2x128xf32>
    %193 = vector.shape_cast %192 : vector<1x2x128xf32> to vector<2x128xf32>
    %194 = vector.shape_cast %190 : vector<2x128xf32> to vector<1x2x128xf32>
    tpu.vector_store %arg18[%191, %c0_63, %c0_64], %194 {strides = array<i32>} : memref<8x2x128xf32, #tpu.memory_space<vmem>>, vector<1x2x128xf32>,
    %c7_i32 = arith.constant 7 : i32
    %195 = arith.index_cast %c7_i32 : i32 to index
    %c0_65 = arith.constant 0 : index
    %c0_66 = arith.constant 0 : index
    %196 = vector.load %arg17[%195, %c0_65, %c0_66] : memref<8x2x512xf32, #tpu.memory_space<vmem>>, vector<1x2x512xf32>
    %197 = vector.shape_cast %196 : vector<1x2x512xf32> to vector<2x512xf32>
    %cst_67 = arith.constant dense<0.000000e+00> : vector<2x512xf32>
    %198 = tpu.matmul %190, %17, %cst_67 {dimension_numbers = #tpu.dot_dimension_numbers<[1], [0], [0], [1], [0, 0, 1, 1], [], []>} : vector<2x128xf32>, vector<128x512xf32>, vector<2x512xf32> -> vector<2x512xf32>
    %199 = arith.addf %197, %198 : vector<2x512xf32>
    %200 = vector.extract_strided_slice %199 {offsets = [0, 0], sizes = [2, 384], strides = [1, 1]} : vector<2x512xf32> to vector<2x384xf32>
    %201 = arith.negf %200 : vector<2x384xf32>
    %202 = math.exp %201 : vector<2x384xf32>
    %cst_68 = arith.constant 1.000000e+00 : f32
    %203 = vector.broadcast %cst_68 : f32 to vector<2x384xf32>
    %204 = arith.addf %203, %202 : vector<2x384xf32>
    %205 = arith.divf %203, %204 : vector<2x384xf32>
    %206 = vector.extract_strided_slice %205 {offsets = [0, 0], sizes = [2, 128], strides = [1, 1]} : vector<2x384xf32> to vector<2x128xf32>
    %207 = vector.extract_strided_slice %205 {offsets = [0, 128], sizes = [2, 128], strides = [1, 1]} : vector<2x384xf32> to vector<2x128xf32>
    %208 = vector.extract_strided_slice %205 {offsets = [0, 256], sizes = [2, 128], strides = [1, 1]} : vector<2x384xf32> to vector<2x128xf32>
    %209 = vector.extract_strided_slice %199 {offsets = [0, 384], sizes = [2, 128], strides = [1, 1]} : vector<2x512xf32> to vector<2x128xf32>
    %210 = math.tanh %209 : vector<2x128xf32>
    %211 = arith.mulf %207, %188 : vector<2x128xf32>
    %212 = arith.mulf %206, %210 : vector<2x128xf32>
    %213 = arith.addf %211, %212 : vector<2x128xf32>
    %214 = math.tanh %213 : vector<2x128xf32>
    %215 = arith.mulf %208, %214 : vector<2x128xf32>
    %216 = arith.index_cast %c7_i32 : i32 to index
    %c0_69 = arith.constant 0 : index
    %c0_70 = arith.constant 0 : index
    %217 = vector.load %arg18[%216, %c0_69, %c0_70] : memref<8x2x128xf32, #tpu.memory_space<vmem>>, vector<1x2x128xf32>
    %218 = vector.shape_cast %217 : vector<1x2x128xf32> to vector<2x128xf32>
    %219 = vector.shape_cast %215 : vector<2x128xf32> to vector<1x2x128xf32>
    tpu.vector_store %arg18[%216, %c0_69, %c0_70], %219 {strides = array<i32>} : memref<8x2x128xf32, #tpu.memory_space<vmem>>, vector<1x2x128xf32>,
    %c8_i32 = arith.constant 8 : i32
    %c0_71 = arith.constant 0 : index
    %c0_72 = arith.constant 0 : index
    %220 = vector.load %arg15[%c0_71, %c0_72] : memref<2x128xf32, #tpu.memory_space<vmem>>, vector<2x128xf32>
    tpu.vector_store %arg15[%c0_71, %c0_72], %215 {strides = array<i32>} : memref<2x128xf32, #tpu.memory_space<vmem>>, vector<2x128xf32>,
    %c0_73 = arith.constant 0 : index
    %c0_74 = arith.constant 0 : index
    %221 = vector.load %arg16[%c0_73, %c0_74] : memref<2x128xf32, #tpu.memory_space<vmem>>, vector<2x128xf32>
    tpu.vector_store %arg16[%c0_73, %c0_74], %213 {strides = array<i32>} : memref<2x128xf32, #tpu.memory_space<vmem>>, vector<2x128xf32>,
    %c0_75 = arith.constant 0 : index
    %c0_76 = arith.constant 0 : index
    %222 = vector.load %arg8[%c0_75, %c0_76] : memref<1x128xf32, #tpu.memory_space<vmem>>, vector<1x128xf32>
    %223 = vector.shape_cast %222 : vector<1x128xf32> to vector<1x1x128xf32>
    %c0_77 = arith.constant 0 : index
    %c0_78 = arith.constant 0 : index
    %c0_79 = arith.constant 0 : index
    %224 = vector.load %arg18[%c0_77, %c0_78, %c0_79] : memref<8x2x128xf32, #tpu.memory_space<vmem>>, vector<8x2x128xf32>
    %225 = vector.broadcast %223 : vector<1x1x128xf32> to vector<8x2x128xf32>
    %226 = arith.mulf %224, %225 : vector<8x2x128xf32>
    %cst_80 = arith.constant dense<0.000000e+00> : vector<8x2xf32>
    %227 = vector.multi_reduction <add>, %226, %cst_80 [2] : vector<8x2x128xf32> to vector<8x2xf32>
    %c0_81 = arith.constant 0 : index
    %c0_82 = arith.constant 0 : index
    %228 = memref.load %arg9[%c0_81, %c0_82] : memref<1x1xf32, #tpu.memory_space<smem>>
    %229 = vector.broadcast %228 : f32 to vector<8x2xf32>
    %230 = arith.addf %227, %229 : vector<8x2xf32>
    %231 = tpu.transpose %230, [1, 0] : vector<8x2xf32> -> vector<2x8xf32>
    %c0_83 = arith.constant 0 : index
    %c0_84 = arith.constant 0 : index
    %232 = vector.load %arg12[%c0_83, %c0_84] : memref<2x8xf32, #tpu.memory_space<vmem>>, vector<2x8xf32>
    tpu.vector_store %arg12[%c0_83, %c0_84], %231 {strides = array<i32>} : memref<2x8xf32, #tpu.memory_space<vmem>>, vector<2x8xf32>,
    %c0_i32_85 = arith.constant 0 : i32
    %233 = arith.cmpi eq, %arg1, %c0_i32_85 : i32
    %234 = arith.extui %233 : i1 to i32
    %c0_i32_86 = arith.constant 0 : i32
    %235 = arith.cmpi ne, %234, %c0_i32_86 : i32
    scf.if %235 {
      %c0_87 = arith.constant 0 : index
      %c0_88 = arith.constant 0 : index
      %236 = vector.load %arg13[%c0_87, %c0_88] : memref<2x128xf32, #tpu.memory_space<vmem>>, vector<2x128xf32>
      tpu.vector_store %arg13[%c0_87, %c0_88], %215 {strides = array<i32>} : memref<2x128xf32, #tpu.memory_space<vmem>>, vector<2x128xf32>,
      %c0_89 = arith.constant 0 : index
      %c0_90 = arith.constant 0 : index
      %237 = vector.load %arg14[%c0_89, %c0_90] : memref<2x128xf32, #tpu.memory_space<vmem>>, vector<2x128xf32>
      tpu.vector_store %arg14[%c0_89, %c0_90], %213 {strides = array<i32>} : memref<2x128xf32, #tpu.memory_space<vmem>>, vector<2x128xf32>,
    } else {
    }
    return
  }
  func.func @transform_0(%arg0: i32, %arg1: i32) -> (i32, i32, i32) {
    %c0_i32 = arith.constant 0 : i32
    %c0_i32_0 = arith.constant 0 : i32
    return %arg1, %arg0, %c0_i32 : i32, i32, i32
  }
  func.func @transform_1(%arg0: i32, %arg1: i32) -> (i32, i32, i32) {
    %c0_i32 = arith.constant 0 : i32
    %c0_i32_0 = arith.constant 0 : i32
    return %arg1, %arg0, %c0_i32 : i32, i32, i32
  }
  func.func @transform_2(%arg0: i32, %arg1: i32) -> (i32, i32) {
    %c0_i32 = arith.constant 0 : i32
    %c0_i32_0 = arith.constant 0 : i32
    %c0_i32_1 = arith.constant 0 : i32
    return %c0_i32, %c0_i32_0 : i32, i32
  }
  func.func @transform_3(%arg0: i32, %arg1: i32) -> (i32, i32) {
    %c0_i32 = arith.constant 0 : i32
    %c0_i32_0 = arith.constant 0 : i32
    %c0_i32_1 = arith.constant 0 : i32
    return %c0_i32, %c0_i32_0 : i32, i32
  }
  func.func @transform_4(%arg0: i32, %arg1: i32) -> (i32, i32) {
    %c0_i32 = arith.constant 0 : i32
    %c0_i32_0 = arith.constant 0 : i32
    %c0_i32_1 = arith.constant 0 : i32
    return %c0_i32, %c0_i32_0 : i32, i32
  }
  func.func @transform_5(%arg0: i32, %arg1: i32) -> (i32, i32) {
    %c0_i32 = arith.constant 0 : i32
    %c0_i32_0 = arith.constant 0 : i32
    %c0_i32_1 = arith.constant 0 : i32
    return %c0_i32, %c0_i32_0 : i32, i32
  }
  func.func @transform_6(%arg0: i32, %arg1: i32) -> (i32, i32) {
    %c0_i32 = arith.constant 0 : i32
    %c0_i32_0 = arith.constant 0 : i32
    %c0_i32_1 = arith.constant 0 : i32
    return %c0_i32, %c0_i32_0 : i32, i32
  }
  func.func @transform_7(%arg0: i32, %arg1: i32) -> (i32, i32) {
    %c0_i32 = arith.constant 0 : i32
    %c0_i32_0 = arith.constant 0 : i32
    %c0_i32_1 = arith.constant 0 : i32
    return %c0_i32, %c0_i32_0 : i32, i32
  }
  func.func @transform_8(%arg0: i32, %arg1: i32) -> (i32, i32) {
    %c0_i32 = arith.constant 0 : i32
    %c0_i32_0 = arith.constant 0 : i32
    return %arg0, %c0_i32 : i32, i32
  }
  func.func @transform_9(%arg0: i32, %arg1: i32) -> (i32, i32) {
    %c0_i32 = arith.constant 0 : i32
    %c0_i32_0 = arith.constant 0 : i32
    return %arg0, %c0_i32 : i32, i32
  }
  func.func @transform_10(%arg0: i32, %arg1: i32) -> (i32, i32) {
    %c0_i32 = arith.constant 0 : i32
    return %arg0, %arg1 : i32, i32
  }
  func.func @transform_11(%arg0: i32, %arg1: i32) -> (i32, i32) {
    %c0_i32 = arith.constant 0 : i32
    %c0_i32_0 = arith.constant 0 : i32
    return %arg0, %c0_i32 : i32, i32
  }
  func.func @transform_12(%arg0: i32, %arg1: i32) -> (i32, i32) {
    %c0_i32 = arith.constant 0 : i32
    %c0_i32_0 = arith.constant 0 : i32
    return %arg0, %c0_i32 : i32, i32
  }
}

</mosaic_0001>

<llo_original>
// kernel: recurrent_value_forward.1
$region0: #{recurrent_value_forward.1}
  #allocation0 [shape = 'u32[]', space=smem, size = 0x4, offset = 0x4, fixed_abs, tag = 'smem constant byte address 0x4 - core index']
  #allocation1 [shape = 'u32[144,128]{1,0:T(1,128)}', space=vmem, size = 0x12000, scoped, tag = 'internal scratch']
  #allocation2 [shape = 'f32[2,128]{1,0:T(2,128)}', space=vmem, size = 0x400, scoped, tag = 'scratch operand']
  #allocation3 [shape = 'f32[2,128]{1,0:T(2,128)}', space=vmem, size = 0x400, scoped, tag = 'scratch operand']
  #allocation4 [shape = 'f32[8,2,512]{2,1,0:T(2,128)}', space=vmem, size = 0x8000, scoped, tag = 'scratch operand']
  #allocation5 [shape = 'f32[8,2,128]{2,1,0:T(2,128)}', space=vmem, size = 0x2000, scoped, tag = 'scratch operand']
  #allocation6 [shape = 'f32[1,1]{1,0:T(1,128)S(6)}', space=smem, size = 0x200, scoped, tag = 'scoped memory for recurrent_value_forward.1']
  %s0 = inlined_call_operand.vmem [shape: f32[8,2,8], index: 0, kind: input, shape index: {}]
  %s1 = inlined_call_operand.vmem [shape: f32[8,2,4], index: 1, kind: input, shape index: {}]
  %s2 = inlined_call_operand.vmem [shape: f32[8,512], index: 2, kind: input, shape index: {}]
  %s3 = inlined_call_operand.vmem [shape: f32[4,512], index: 3, kind: input, shape index: {}]
  %s4 = inlined_call_operand.vmem [shape: f32[128,512], index: 4, kind: input, shape index: {}]
  %s5 = inlined_call_operand.vmem [shape: f32[1,512], index: 5, kind: input, shape index: {}]
  %s6 = inlined_call_operand.vmem [shape: f32[1,128], index: 6, kind: input, shape index: {}]
  %s7 = inlined_call_operand.<no memory space> [shape: f32[1,1], index: 7, kind: input, shape index: {}]
  %s8 = inlined_call_operand.vmem [shape: f32[2,128], index: 8, kind: input, shape index: {}]
  %s9 = inlined_call_operand.vmem [shape: f32[2,128], index: 9, kind: input, shape index: {}]
  %s10 = inlined_call_operand.hbm [shape: f32[2,8], index: 10, kind: output, shape index: {0}]
  %s11 = inlined_call_operand.vmem [shape: f32[2,128], index: 11, kind: output, shape index: {1}]
  %s12 = inlined_call_operand.vmem [shape: f32[2,128], index: 12, kind: output, shape index: {2}]
  %13 = xla_tuple %s10, %s11, %s12
  %s14 = sld [smem:[#allocation0]]
  $region74: #{recurrent_value_forward.1} parent=0
    _
  %s16 = ssub.s32 1, %s14
  %s17 = scalar_select 0, %s16, %s14
  %18 = sst [smem:[#allocation6]] %s7
  $region1: #{recurrent_value_forward.1} parent=0
    #allocation7 [shape = 'u8[1024]{0}', space=vmem, size = 0x400, scoped, tag = 'output window, operand 0, single buffered']
    #allocation8 [shape = 's32[1]{0}', space=sflag, size = 0x4, scoped, tag = 'scoped memory for recurrent_value_forward.1']
    %19 = vsyncpa [#allocation8], 0
    // Predicated region
    $region2: #{recurrent_value_forward.1} parent=1 // pred_check
      _
    $region3: #{recurrent_value_forward.1} parent=1 // pred_check_branch
      %21 = sbr.rel (0) target = $region5
    $region4: #{recurrent_value_forward.1} parent=1 // pred_region
      _
    $region5: #{recurrent_value_forward.1} parent=1 // pred_fallthru
      _
    // Predicated region
    $region6: #{recurrent_value_forward.1} parent=1 // pred_check
      _
    $region7: #{recurrent_value_forward.1} parent=1 // pred_check_branch
      %23 = sbr.rel (0) target = $region9
    $region8: #{recurrent_value_forward.1} parent=1 // pred_region
      _
    $region9: #{recurrent_value_forward.1} parent=1 // pred_fallthru
      _
    // Predicated region
    $region10: #{recurrent_value_forward.1} parent=1 // pred_check
      _
    $region11: #{recurrent_value_forward.1} parent=1 // pred_check_branch
      %25 = sbr.rel (0) target = $region13
    $region12: #{recurrent_value_forward.1} parent=1 // pred_region
      _
    $region13: #{recurrent_value_forward.1} parent=1 // pred_fallthru
      _
    // Predicated region
    $region14: #{recurrent_value_forward.1} parent=1 // pred_check
      _
    $region15: #{recurrent_value_forward.1} parent=1 // pred_check_branch
      %27 = sbr.rel (0) target = $region17
    $region16: #{recurrent_value_forward.1} parent=1 // pred_region
      _
    $region17: #{recurrent_value_forward.1} parent=1 // pred_fallthru
      _
    // Predicated region
    $region18: #{recurrent_value_forward.1} parent=1 // pred_check
      _
    $region19: #{recurrent_value_forward.1} parent=1 // pred_check_branch
      %29 = sbr.rel (0) target = $region21
    $region20: #{recurrent_value_forward.1} parent=1 // pred_region
      _
    $region21: #{recurrent_value_forward.1} parent=1 // pred_fallthru
      _
    // Predicated region
    $region22: #{recurrent_value_forward.1} parent=1 // pred_check
      _
    $region23: #{recurrent_value_forward.1} parent=1 // pred_check_branch
      %31 = sbr.rel (0) target = $region25
    $region24: #{recurrent_value_forward.1} parent=1 // pred_region
      _
    $region25: #{recurrent_value_forward.1} parent=1 // pred_fallthru
      _
    // Predicated region
    $region26: #{recurrent_value_forward.1} parent=1 // pred_check
      _
    $region27: #{recurrent_value_forward.1} parent=1 // pred_check_branch
      %33 = sbr.rel (0) target = $region29
    $region28: #{recurrent_value_forward.1} parent=1 // pred_region
      _
    $region29: #{recurrent_value_forward.1} parent=1 // pred_fallthru
      _
    // Predicated region
    $region30: #{recurrent_value_forward.1} parent=1 // pred_check
      _
    $region31: #{recurrent_value_forward.1} parent=1 // pred_check_branch
      %35 = sbr.rel (0) target = $region33
    $region32: #{recurrent_value_forward.1} parent=1 // pred_region
      _
    $region33: #{recurrent_value_forward.1} parent=1 // pred_fallthru
      _
    // Predicated region
    $region34: #{recurrent_value_forward.1} parent=1 // pred_check
      _
    $region35: #{recurrent_value_forward.1} parent=1 // pred_check_branch
      %37 = sbr.rel (0) target = $region37
    $region36: #{recurrent_value_forward.1} parent=1 // pred_region
      _
    $region37: #{recurrent_value_forward.1} parent=1 // pred_fallthru
      _
    // Predicated region
    $region38: #{recurrent_value_forward.1} parent=1 // pred_check
      _
    $region39: #{recurrent_value_forward.1} parent=1 // pred_check_branch
      %39 = sbr.rel (0) target = $region41
    $region40: #{recurrent_value_forward.1} parent=1 // pred_region
      _
    $region41: #{recurrent_value_forward.1} parent=1 // pred_fallthru
      _
    %p40 = scmp.eq.s32.totalorder 0, 0
    // Predicated region
    $region42: #{recurrent_value_forward.1} parent=1 // pred_check
      %p41 = pneg %p40
    $region43: #{recurrent_value_forward.1} parent=1 // pred_check_branch
      %43 = sbr.rel (%p41) target = $region45
    $region44: #{recurrent_value_forward.1} parent=1 // pred_region
      %v44 = vld [vmem:[%s8] sm:$0x3]
      %45 = vst [vmem:[#allocation2] sm:$0x3] %v44
      %v46 = vld [vmem:[%s9] sm:$0x3]
      %47 = vst [vmem:[#allocation3] sm:$0x3] %v46
    $region45: #{recurrent_value_forward.1} parent=1 // pred_fallthru
      _
    %v48 = vld [vmem:[%s0] sm:$0x3]
    %v49 = vld [vmem:[%s0 + $0x2] sm:$0x3]
    %v50 = vld [vmem:[%s0 + $0x4] sm:$0x3]
    %v51 = vld [vmem:[%s0 + $0x6] sm:$0x3]
    %v52 = vld [vmem:[%s0 + $0x8] sm:$0x3]
    %v53 = vld [vmem:[%s0 + $0xa] sm:$0x3]
    %v54 = vld [vmem:[%s0 + $0xc] sm:$0x3]
    %v55 = vld [vmem:[%s0 + $0xe] sm:$0x3]
    %v56 = vld [vmem:[%s1] sm:$0x3]
    %v57 = vld [vmem:[%s1 + $0x2] sm:$0x3]
    %v58 = vld [vmem:[%s1 + $0x4] sm:$0x3]
    %v59 = vld [vmem:[%s1 + $0x6] sm:$0x3]
    %v60 = vld [vmem:[%s1 + $0x8] sm:$0x3]
    %v61 = vld [vmem:[%s1 + $0xa] sm:$0x3]
    %v62 = vld [vmem:[%s1 + $0xc] sm:$0x3]
    %v63 = vld [vmem:[%s1 + $0xe] sm:$0x3]
    %v64 = vld [vmem:[%s2] sm:$0xff]
    %v65 = vld [vmem:[%s2 + $0x8] sm:$0xff]
    %v66 = vld [vmem:[%s2 + $0x10] sm:$0xff]
    %v67 = vld [vmem:[%s2 + $0x18] sm:$0xff]
    %v68 = vld [vmem:[%s3] sm:$0xff]
    %v69 = vld [vmem:[%s3 + $0x8] sm:$0xff]
    %v78 = vcombine.low %v56, %v57
    %v79 = vcombine.low %v58, %v59
    %v81 = vunpack.c.l.s4 1983009808
    %v82 = vunpack.c.0.s8 %v81
    %v83 = vlaneseq
    %v84 = vshrl.u32 %v83, 7
    %v85 = vsub.s32 %v82, %v84
    %v86 = vrot.slane %v78, %v85
    %v88 = vunpack.c.l.s4 1983009808
    %v89 = vunpack.c.0.s8 %v88
    %v90 = vlaneseq
    %v91 = vshrl.u32 %v90, 7
    %v92 = vsub.s32 %v89, %v91
    %v93 = vrot.slane %v79, %v92
    %v94 = vcombine.low %v86, %v93
    %v95 = vcombine.low %v60, %v61
    %v96 = vcombine.low %v62, %v63
    %v98 = vunpack.c.l.s4 1983009808
    %v99 = vunpack.c.0.s8 %v98
    %v100 = vlaneseq
    %v101 = vshrl.u32 %v100, 7
    %v102 = vsub.s32 %v99, %v101
    %v103 = vrot.slane %v95, %v102
    %v105 = vunpack.c.l.s4 1983009808
    %v106 = vunpack.c.0.s8 %v105
    %v107 = vlaneseq
    %v108 = vshrl.u32 %v107, 7
    %v109 = vsub.s32 %v106, %v108
    %v110 = vrot.slane %v96, %v109
    %v111 = vcombine.low %v103, %v110
    %v114 = vcombine.high %v68, %v68
    %v115 = vcombine.high %v69, %v69
    %vm116 = vcmask 31744
    %v117 = vsel %vm116, %v94, 0
    %v119 = vsel %vm116, %v111, 0
    %vm121 = vcmask 1043456
    %v122 = vsel %vm121, %v68, 0
    %v124 = vsel %vm121, %v114, 0
    %v126 = vsel %vm121, %v69, 0
    %v128 = vsel %vm121, %v115, 0
    %130 = vmatprep.subr.mxu0 %v124
    %131 = vmatpush1.msra.mxu0 %v122
    %132 = vmatprep.subr.mxu0 0.0
    %133 = vmatpush1.msra.mxu0 0.0
    %134 = vmatprep.subr.mxu0 0.0
    %135 = vmatpush1.msra.mxu0 0.0
    %136 = vmatprep.subr.mxu0 0.0
    %137 = vmatpush1.msra.mxu0 0.0
    %138 = vmatprep.subr.mxu0 0.0
    %139 = vmatpush1.msra.mxu0 0.0
    %140 = vmatprep.subr.mxu0 0.0
    %141 = vmatpush1.msra.mxu0 0.0
    %142 = vmatprep.subr.mxu0 0.0
    %143 = vmatpush1.msra.mxu0 0.0
    %144 = vmatprep.subr.mxu0 0.0
    %145 = vmatpush1.msra.mxu0 0.0
    %146 = vmatprep.subr.mxu0 0.0
    %147 = vmatpush1.msra.mxu0 0.0
    %148 = vmatprep.subr.mxu0 0.0
    %149 = vmatpush1.msra.mxu0 0.0
    %150 = vmatprep.subr.mxu0 0.0
    %151 = vmatpush1.msra.mxu0 0.0
    %152 = vmatprep.subr.mxu0 0.0
    %153 = vmatpush1.msra.mxu0 0.0
    %154 = vmatprep.subr.mxu0 0.0
    %155 = vmatpush1.msra.mxu0 0.0
    %156 = vmatprep.subr.mxu0 0.0
    %157 = vmatpush1.msra.mxu0 0.0
    %158 = vmatprep.subr.mxu0 0.0
    %159 = vmatpush1.msra.mxu0 0.0
    %160 = vmatprep.subr.mxu0 0.0
    %161 = vmatpush1.msra.mxu0 0.0
    %162 = vmatprep.subr.mxu0 0.0
    %163 = vmatpush1.msra.mxu0 0.0
    %164 = vmatprep.subr.mxu0 0.0
    %165 = vmatpush1.msra.mxu0 0.0
    %166 = vmatprep.subr.mxu0 0.0
    %167 = vmatpush1.msra.mxu0 0.0
    %168 = vmatprep.subr.mxu0 0.0
    %169 = vmatpush1.msra.mxu0 0.0
    %170 = vmatprep.subr.mxu0 0.0
    %171 = vmatpush1.msra.mxu0 0.0
    %172 = vmatprep.subr.mxu0 0.0
    %173 = vmatpush1.msra.mxu0 0.0
    %174 = vmatprep.subr.mxu0 0.0
    %175 = vmatpush1.msra.mxu0 0.0
    %176 = vmatprep.subr.mxu0 0.0
    %177 = vmatpush1.msra.mxu0 0.0
    %178 = vmatprep.subr.mxu0 0.0
    %179 = vmatpush1.msra.mxu0 0.0
    %180 = vmatprep.subr.mxu0 0.0
    %181 = vmatpush1.msra.mxu0 0.0
    %182 = vmatprep.subr.mxu0 0.0
    %183 = vmatpush1.msra.mxu0 0.0
    %184 = vmatprep.subr.mxu0 0.0
    %185 = vmatpush1.msra.mxu0 0.0
    %186 = vmatprep.subr.mxu0 0.0
    %187 = vmatpush1.msra.mxu0 0.0
    %188 = vmatprep.subr.mxu0 0.0
    %189 = vmatpush1.msra.mxu0 0.0
    %190 = vmatprep.subr.mxu0 0.0
    %191 = vmatpush1.msra.mxu0 0.0
    %192 = vmatprep.subr.mxu0 0.0
    %193 = vmatpush1.msra.mxu0 0.0
    %194 = vmatprep.mubr.f32.mxu0 0.0
    %195 = vmatmul.mubr.f32.gmra.mrb[0].mxu0 %v117
    %v196 = vpop.f32.mrb[0].mxu0
    %v197 = vadd.f32 0.0, %v196
    %v198 = vpop.f32.mrb[0].mxu0
    %v199 = vadd.f32 0.0, %v198
    %200 = vmatprep.mubr.f32.mxu0 0.0
    %201 = vmatmul.mubr.f32.gmra.mrb[0].mxu0 %v119
    %v202 = vpop.f32.mrb[0].mxu0
    %v203 = vadd.f32 0.0, %v202
    %v204 = vpop.f32.mrb[0].mxu0
    %v205 = vadd.f32 0.0, %v204
    %206 = vdwg.mxu0
    %207 = vmatprep.subr.mxu0 %v128
    %208 = vmatpush1.msra.mxu0 %v126
    %209 = vmatprep.subr.mxu0 0.0
    %210 = vmatpush1.msra.mxu0 0.0
    %211 = vmatprep.subr.mxu0 0.0
    %212 = vmatpush1.msra.mxu0 0.0
    %213 = vmatprep.subr.mxu0 0.0
    %214 = vmatpush1.msra.mxu0 0.0
    %215 = vmatprep.subr.mxu0 0.0
    %216 = vmatpush1.msra.mxu0 0.0
    %217 = vmatprep.subr.mxu0 0.0
    %218 = vmatpush1.msra.mxu0 0.0
    %219 = vmatprep.subr.mxu0 0.0
    %220 = vmatpush1.msra.mxu0 0.0
    %221 = vmatprep.subr.mxu0 0.0
    %222 = vmatpush1.msra.mxu0 0.0
    %223 = vmatprep.subr.mxu0 0.0
    %224 = vmatpush1.msra.mxu0 0.0
    %225 = vmatprep.subr.mxu0 0.0
    %226 = vmatpush1.msra.mxu0 0.0
    %227 = vmatprep.subr.mxu0 0.0
    %228 = vmatpush1.msra.mxu0 0.0
    %229 = vmatprep.subr.mxu0 0.0
    %230 = vmatpush1.msra.mxu0 0.0
    %231 = vmatprep.subr.mxu0 0.0
    %232 = vmatpush1.msra.mxu0 0.0
    %233 = vmatprep.subr.mxu0 0.0
    %234 = vmatpush1.msra.mxu0 0.0
    %235 = vmatprep.subr.mxu0 0.0
    %236 = vmatpush1.msra.mxu0 0.0
    %237 = vmatprep.subr.mxu0 0.0
    %238 = vmatpush1.msra.mxu0 0.0
    %239 = vmatprep.subr.mxu0 0.0
    %240 = vmatpush1.msra.mxu0 0.0
    %241 = vmatprep.subr.mxu0 0.0
    %242 = vmatpush1.msra.mxu0 0.0
    %243 = vmatprep.subr.mxu0 0.0
    %244 = vmatpush1.msra.mxu0 0.0
    %245 = vmatprep.subr.mxu0 0.0
    %246 = vmatpush1.msra.mxu0 0.0
    %247 = vmatprep.subr.mxu0 0.0
    %248 = vmatpush1.msra.mxu0 0.0
    %249 = vmatprep.subr.mxu0 0.0
    %250 = vmatpush1.msra.mxu0 0.0
    %251 = vmatprep.subr.mxu0 0.0
    %252 = vmatpush1.msra.mxu0 0.0
    %253 = vmatprep.subr.mxu0 0.0
    %254 = vmatpush1.msra.mxu0 0.0
    %255 = vmatprep.subr.mxu0 0.0
    %256 = vmatpush1.msra.mxu0 0.0
    %257 = vmatprep.subr.mxu0 0.0
    %258 = vmatpush1.msra.mxu0 0.0
    %259 = vmatprep.subr.mxu0 0.0
    %260 = vmatpush1.msra.mxu0 0.0
    %261 = vmatprep.subr.mxu0 0.0
    %262 = vmatpush1.msra.mxu0 0.0
    %263 = vmatprep.subr.mxu0 0.0
    %264 = vmatpush1.msra.mxu0 0.0
    %265 = vmatprep.subr.mxu0 0.0
    %266 = vmatpush1.msra.mxu0 0.0
    %267 = vmatprep.subr.mxu0 0.0
    %268 = vmatpush1.msra.mxu0 0.0
    %269 = vmatprep.subr.mxu0 0.0
    %270 = vmatpush1.msra.mxu0 0.0
    %271 = vmatprep.mubr.f32.mxu0 0.0
    %272 = vmatmul.mubr.f32.gmra.mrb[0].mxu0 %v117
    %v273 = vpop.f32.mrb[0].mxu0
    %v274 = vadd.f32 0.0, %v273
    %v275 = vpop.f32.mrb[0].mxu0
    %v276 = vadd.f32 0.0, %v275
    %277 = vmatprep.mubr.f32.mxu0 0.0
    %278 = vmatmul.mubr.f32.gmra.mrb[0].mxu0 %v119
    %v279 = vpop.f32.mrb[0].mxu0
    %v280 = vadd.f32 0.0, %v279
    %v281 = vpop.f32.mrb[0].mxu0
    %v282 = vadd.f32 0.0, %v281
    %283 = vdwg.mxu0
    %v292 = vcombine.low %v48, %v49
    %v293 = vcombine.low %v50, %v51
    %v295 = vunpack.c.l.s4 1983009808
    %v296 = vunpack.c.0.s8 %v295
    %v297 = vlaneseq
    %v298 = vshrl.u32 %v297, 7
    %v299 = vsub.s32 %v296, %v298
    %v300 = vrot.slane %v292, %v299
    %v302 = vunpack.c.l.s4 1983009808
    %v303 = vunpack.c.0.s8 %v302
    %v304 = vlaneseq
    %v305 = vshrl.u32 %v304, 7
    %v306 = vsub.s32 %v303, %v305
    %v307 = vrot.slane %v293, %v306
    %v308 = vcombine.low %v300, %v307
    %v309 = vcombine.low %v52, %v53
    %v310 = vcombine.low %v54, %v55
    %v312 = vunpack.c.l.s4 1983009808
    %v313 = vunpack.c.0.s8 %v312
    %v314 = vlaneseq
    %v315 = vshrl.u32 %v314, 7
    %v316 = vsub.s32 %v313, %v315
    %v317 = vrot.slane %v309, %v316
    %v319 = vunpack.c.l.s4 1983009808
    %v320 = vunpack.c.0.s8 %v319
    %v321 = vlaneseq
    %v322 = vshrl.u32 %v321, 7
    %v323 = vsub.s32 %v320, %v322
    %v324 = vrot.slane %v310, %v323
    %v325 = vcombine.low %v317, %v324
    %vm326 = vcmask 64512
    %v327 = vsel %vm326, %v308, 0
    %v329 = vsel %vm326, %v325, 0
    %331 = vmatprep.subr.mxu0 %v65
    %332 = vmatpush1.msra.mxu0 %v64
    %333 = vmatprep.subr.mxu0 0.0
    %334 = vmatpush1.msra.mxu0 0.0
    %335 = vmatprep.subr.mxu0 0.0
    %336 = vmatpush1.msra.mxu0 0.0
    %337 = vmatprep.subr.mxu0 0.0
    %338 = vmatpush1.msra.mxu0 0.0
    %339 = vmatprep.subr.mxu0 0.0
    %340 = vmatpush1.msra.mxu0 0.0
    %341 = vmatprep.subr.mxu0 0.0
    %342 = vmatpush1.msra.mxu0 0.0
    %343 = vmatprep.subr.mxu0 0.0
    %344 = vmatpush1.msra.mxu0 0.0
    %345 = vmatprep.subr.mxu0 0.0
    %346 = vmatpush1.msra.mxu0 0.0
    %347 = vmatprep.subr.mxu0 0.0
    %348 = vmatpush1.msra.mxu0 0.0
    %349 = vmatprep.subr.mxu0 0.0
    %350 = vmatpush1.msra.mxu0 0.0
    %351 = vmatprep.subr.mxu0 0.0
    %352 = vmatpush1.msra.mxu0 0.0
    %353 = vmatprep.subr.mxu0 0.0
    %354 = vmatpush1.msra.mxu0 0.0
    %355 = vmatprep.subr.mxu0 0.0
    %356 = vmatpush1.msra.mxu0 0.0
    %357 = vmatprep.subr.mxu0 0.0
    %358 = vmatpush1.msra.mxu0 0.0
    %359 = vmatprep.subr.mxu0 0.0
    %360 = vmatpush1.msra.mxu0 0.0
    %361 = vmatprep.subr.mxu0 0.0
    %362 = vmatpush1.msra.mxu0 0.0
    %363 = vmatprep.subr.mxu0 0.0
    %364 = vmatpush1.msra.mxu0 0.0
    %365 = vmatprep.subr.mxu0 0.0
    %366 = vmatpush1.msra.mxu0 0.0
    %367 = vmatprep.subr.mxu0 0.0
    %368 = vmatpush1.msra.mxu0 0.0
    %369 = vmatprep.subr.mxu0 0.0
    %370 = vmatpush1.msra.mxu0 0.0
    %371 = vmatprep.subr.mxu0 0.0
    %372 = vmatpush1.msra.mxu0 0.0
    %373 = vmatprep.subr.mxu0 0.0
    %374 = vmatpush1.msra.mxu0 0.0
    %375 = vmatprep.subr.mxu0 0.0
    %376 = vmatpush1.msra.mxu0 0.0
    %377 = vmatprep.subr.mxu0 0.0
    %378 = vmatpush1.msra.mxu0 0.0
    %379 = vmatprep.subr.mxu0 0.0
    %380 = vmatpush1.msra.mxu0 0.0
    %381 = vmatprep.subr.mxu0 0.0
    %382 = vmatpush1.msra.mxu0 0.0
    %383 = vmatprep.subr.mxu0 0.0
    %384 = vmatpush1.msra.mxu0 0.0
    %385 = vmatprep.subr.mxu0 0.0
    %386 = vmatpush1.msra.mxu0 0.0
    %387 = vmatprep.subr.mxu0 0.0
    %388 = vmatpush1.msra.mxu0 0.0
    %389 = vmatprep.subr.mxu0 0.0
    %390 = vmatpush1.msra.mxu0 0.0
    %391 = vmatprep.subr.mxu0 0.0
    %392 = vmatpush1.msra.mxu0 0.0
    %393 = vmatprep.subr.mxu0 0.0
    %394 = vmatpush1.msra.mxu0 0.0
    %395 = vmatprep.mubr.f32.mxu0 0.0
    %396 = vmatmul.mubr.f32.gmra.mrb[0].mxu0 %v327
    %v397 = vpop.f32.mrb[0].mxu0
    %v398 = vadd.f32 %v197, %v397
    %v399 = vpop.f32.mrb[0].mxu0
    %v400 = vadd.f32 %v199, %v399
    %401 = vmatprep.mubr.f32.mxu0 0.0
    %402 = vmatmul.mubr.f32.gmra.mrb[0].mxu0 %v329
    %v403 = vpop.f32.mrb[0].mxu0
    %v404 = vadd.f32 %v203, %v403
    %v405 = vpop.f32.mrb[0].mxu0
    %v406 = vadd.f32 %v205, %v405
    %407 = vdwg.mxu0
    %408 = vmatprep.subr.mxu0 %v67
    %409 = vmatpush1.msra.mxu0 %v66
    %410 = vmatprep.subr.mxu0 0.0
    %411 = vmatpush1.msra.mxu0 0.0
    %412 = vmatprep.subr.mxu0 0.0
    %413 = vmatpush1.msra.mxu0 0.0
    %414 = vmatprep.subr.mxu0 0.0
    %415 = vmatpush1.msra.mxu0 0.0
    %416 = vmatprep.subr.mxu0 0.0
    %417 = vmatpush1.msra.mxu0 0.0
    %418 = vmatprep.subr.mxu0 0.0
    %419 = vmatpush1.msra.mxu0 0.0
    %420 = vmatprep.subr.mxu0 0.0
    %421 = vmatpush1.msra.mxu0 0.0
    %422 = vmatprep.subr.mxu0 0.0
    %423 = vmatpush1.msra.mxu0 0.0
    %424 = vmatprep.subr.mxu0 0.0
    %425 = vmatpush1.msra.mxu0 0.0
    %426 = vmatprep.subr.mxu0 0.0
    %427 = vmatpush1.msra.mxu0 0.0
    %428 = vmatprep.subr.mxu0 0.0
    %429 = vmatpush1.msra.mxu0 0.0
    %430 = vmatprep.subr.mxu0 0.0
    %431 = vmatpush1.msra.mxu0 0.0
    %432 = vmatprep.subr.mxu0 0.0
    %433 = vmatpush1.msra.mxu0 0.0
    %434 = vmatprep.subr.mxu0 0.0
    %435 = vmatpush1.msra.mxu0 0.0
    %436 = vmatprep.subr.mxu0 0.0
    %437 = vmatpush1.msra.mxu0 0.0
    %438 = vmatprep.subr.mxu0 0.0
    %439 = vmatpush1.msra.mxu0 0.0
    %440 = vmatprep.subr.mxu0 0.0
    %441 = vmatpush1.msra.mxu0 0.0
    %442 = vmatprep.subr.mxu0 0.0
    %443 = vmatpush1.msra.mxu0 0.0
    %444 = vmatprep.subr.mxu0 0.0
    %445 = vmatpush1.msra.mxu0 0.0
    %446 = vmatprep.subr.mxu0 0.0
    %447 = vmatpush1.msra.mxu0 0.0
    %448 = vmatprep.subr.mxu0 0.0
    %449 = vmatpush1.msra.mxu0 0.0
    %450 = vmatprep.subr.mxu0 0.0
    %451 = vmatpush1.msra.mxu0 0.0
    %452 = vmatprep.subr.mxu0 0.0
    %453 = vmatpush1.msra.mxu0 0.0
    %454 = vmatprep.subr.mxu0 0.0
    %455 = vmatpush1.msra.mxu0 0.0
    %456 = vmatprep.subr.mxu0 0.0
    %457 = vmatpush1.msra.mxu0 0.0
    %458 = vmatprep.subr.mxu0 0.0
    %459 = vmatpush1.msra.mxu0 0.0
    %460 = vmatprep.subr.mxu0 0.0
    %461 = vmatpush1.msra.mxu0 0.0
    %462 = vmatprep.subr.mxu0 0.0
    %463 = vmatpush1.msra.mxu0 0.0
    %464 = vmatprep.subr.mxu0 0.0
    %465 = vmatpush1.msra.mxu0 0.0
    %466 = vmatprep.subr.mxu0 0.0
    %467 = vmatpush1.msra.mxu0 0.0
    %468 = vmatprep.subr.mxu0 0.0
    %469 = vmatpush1.msra.mxu0 0.0
    %470 = vmatprep.subr.mxu0 0.0
    %471 = vmatpush1.msra.mxu0 0.0
    %472 = vmatprep.mubr.f32.mxu0 0.0
    %473 = vmatmul.mubr.f32.gmra.mrb[0].mxu0 %v327
    %v474 = vpop.f32.mrb[0].mxu0
    %v475 = vadd.f32 %v274, %v474
    %v476 = vpop.f32.mrb[0].mxu0
    %v477 = vadd.f32 %v276, %v476
    %478 = vmatprep.mubr.f32.mxu0 0.0
    %479 = vmatmul.mubr.f32.gmra.mrb[0].mxu0 %v329
    %v480 = vpop.f32.mrb[0].mxu0
    %v481 = vadd.f32 %v280, %v480
    %v482 = vpop.f32.mrb[0].mxu0
    %v483 = vadd.f32 %v282, %v482
    %484 = vdwg.mxu0
    %v485 = vld [vmem:[%s5] sm:$0xf]
    %v487 = vlaneseq
    %v488 = vshrl.u32 %v487, 7
    %v489 = vsub.s32 0, %v488
    %v490 = vrot.slane %v485, %v489
    %v491 = vlaneseq
    %v492 = vshrl.u32 %v491, 7
    %v493 = vsub.s32 1, %v492
    %v494 = vrot.slane %v485, %v493
    %v495 = vlaneseq
    %v496 = vshrl.u32 %v495, 7
    %v497 = vsub.s32 2, %v496
    %v498 = vrot.slane %v485, %v497
    %v499 = vlaneseq
    %v500 = vshrl.u32 %v499, 7
    %v501 = vsub.s32 3, %v500
    %v502 = vrot.slane %v485, %v501
    %v507 = vadd.f32 %v398, %v490
    %v508 = vadd.f32 %v400, %v494
    %v509 = vadd.f32 %v475, %v498
    %v510 = vadd.f32 %v477, %v502
    %v511 = vadd.f32 %v404, %v490
    %v512 = vadd.f32 %v406, %v494
    %v513 = vadd.f32 %v481, %v498
    %v514 = vadd.f32 %v483, %v502
    %v523 = vcombine.low %v507, %v508
    %v524 = vcombine.high %v507, %v508
    %v525 = vcombine.low %v509, %v510
    %v526 = vcombine.high %v509, %v510
    %v528 = vunpack.c.l.s4 1983009808
    %v529 = vunpack.c.0.s8 %v528
    %v530 = vlaneseq
    %v531 = vshrl.u32 %v530, 7
    %v532 = vsub.s32 %v529, %v531
    %v533 = vrot.slane %v523, %v532
    %v535 = vunpack.c.l.s4 1983009808
    %v536 = vunpack.c.0.s8 %v535
    %v537 = vlaneseq
    %v538 = vshrl.u32 %v537, 7
    %v539 = vsub.s32 %v536, %v538
    %v540 = vrot.slane %v524, %v539
    %v542 = vunpack.c.l.s4 1983009808
    %v543 = vunpack.c.0.s8 %v542
    %v544 = vlaneseq
    %v545 = vshrl.u32 %v544, 7
    %v546 = vsub.s32 %v543, %v545
    %v547 = vrot.slane %v525, %v546
    %v549 = vunpack.c.l.s4 1983009808
    %v550 = vunpack.c.0.s8 %v549
    %v551 = vlaneseq
    %v552 = vshrl.u32 %v551, 7
    %v553 = vsub.s32 %v550, %v552
    %v554 = vrot.slane %v526, %v553
    %v555 = vcombine.low %v533, %v547
    %v556 = vcombine.high %v533, %v547
    %v557 = vcombine.low %v540, %v554
    %v558 = vcombine.high %v540, %v554
    %v559 = vcombine.low %v511, %v512
    %v560 = vcombine.high %v511, %v512
    %v561 = vcombine.low %v513, %v514
    %v562 = vcombine.high %v513, %v514
    %v564 = vunpack.c.l.s4 1983009808
    %v565 = vunpack.c.0.s8 %v564
    %v566 = vlaneseq
    %v567 = vshrl.u32 %v566, 7
    %v568 = vsub.s32 %v565, %v567
    %v569 = vrot.slane %v559, %v568
    %v571 = vunpack.c.l.s4 1983009808
    %v572 = vunpack.c.0.s8 %v571
    %v573 = vlaneseq
    %v574 = vshrl.u32 %v573, 7
    %v575 = vsub.s32 %v572, %v574
    %v576 = vrot.slane %v560, %v575
    %v578 = vunpack.c.l.s4 1983009808
    %v579 = vunpack.c.0.s8 %v578
    %v580 = vlaneseq
    %v581 = vshrl.u32 %v580, 7
    %v582 = vsub.s32 %v579, %v581
    %v583 = vrot.slane %v561, %v582
    %v585 = vunpack.c.l.s4 1983009808
    %v586 = vunpack.c.0.s8 %v585
    %v587 = vlaneseq
    %v588 = vshrl.u32 %v587, 7
    %v589 = vsub.s32 %v586, %v588
    %v590 = vrot.slane %v562, %v589
    %v591 = vcombine.low %v569, %v583
    %v592 = vcombine.high %v569, %v583
    %v593 = vcombine.low %v576, %v590
    %v594 = vcombine.high %v576, %v590
    %603 = vst [vmem:[#allocation4] sm:$0xff] %v555
    %604 = vst [vmem:[#allocation4 + $0x8] sm:$0xff] %v556
    %605 = vst [vmem:[#allocation4 + $0x10] sm:$0xff] %v557
    %606 = vst [vmem:[#allocation4 + $0x18] sm:$0xff] %v558
    %607 = vst [vmem:[#allocation4 + $0x20] sm:$0xff] %v591
    %608 = vst [vmem:[#allocation4 + $0x28] sm:$0xff] %v592
    %609 = vst [vmem:[#allocation4 + $0x30] sm:$0xff] %v593
    %610 = vst [vmem:[#allocation4 + $0x38] sm:$0xff] %v594
    %v611 = vld [vmem:[%s4] sm:$0xff]
    %v612 = vld [vmem:[%s4 + $0x8] sm:$0xff]
    %v613 = vld [vmem:[%s4 + $0x10] sm:$0xff]
    %v614 = vld [vmem:[%s4 + $0x18] sm:$0xff]
    %v615 = vld [vmem:[%s4 + $0x20] sm:$0xff]
    %v616 = vld [vmem:[%s4 + $0x28] sm:$0xff]
    %v617 = vld [vmem:[%s4 + $0x30] sm:$0xff]
    %v618 = vld [vmem:[%s4 + $0x38] sm:$0xff]
    %v619 = vld [vmem:[%s4 + $0x40] sm:$0xff]
    %v620 = vld [vmem:[%s4 + $0x48] sm:$0xff]
    %v621 = vld [vmem:[%s4 + $0x50] sm:$0xff]
    %v622 = vld [vmem:[%s4 + $0x58] sm:$0xff]
    %v623 = vld [vmem:[%s4 + $0x60] sm:$0xff]
    %v624 = vld [vmem:[%s4 + $0x68] sm:$0xff]
    %v625 = vld [vmem:[%s4 + $0x70] sm:$0xff]
    %v626 = vld [vmem:[%s4 + $0x78] sm:$0xff]
    %v627 = vld [vmem:[%s4 + $0x80] sm:$0xff]
    %v628 = vld [vmem:[%s4 + $0x88] sm:$0xff]
    %v629 = vld [vmem:[%s4 + $0x90] sm:$0xff]
    %v630 = vld [vmem:[%s4 + $0x98] sm:$0xff]
    %v631 = vld [vmem:[%s4 + $0xa0] sm:$0xff]
    %v632 = vld [vmem:[%s4 + $0xa8] sm:$0xff]
    %v633 = vld [vmem:[%s4 + $0xb0] sm:$0xff]
    %v634 = vld [vmem:[%s4 + $0xb8] sm:$0xff]
    %v635 = vld [vmem:[%s4 + $0xc0] sm:$0xff]
    %v636 = vld [vmem:[%s4 + $0xc8] sm:$0xff]
    %v637 = vld [vmem:[%s4 + $0xd0] sm:$0xff]
    %v638 = vld [vmem:[%s4 + $0xd8] sm:$0xff]
    %v639 = vld [vmem:[%s4 + $0xe0] sm:$0xff]
    %v640 = vld [vmem:[%s4 + $0xe8] sm:$0xff]
    %v641 = vld [vmem:[%s4 + $0xf0] sm:$0xff]
    %v642 = vld [vmem:[%s4 + $0xf8] sm:$0xff]
    %v643 = vld [vmem:[%s4 + $0x100] sm:$0xff]
    %v644 = vld [vmem:[%s4 + $0x108] sm:$0xff]
    %v645 = vld [vmem:[%s4 + $0x110] sm:$0xff]
    %v646 = vld [vmem:[%s4 + $0x118] sm:$0xff]
    %v647 = vld [vmem:[%s4 + $0x120] sm:$0xff]
    %v648 = vld [vmem:[%s4 + $0x128] sm:$0xff]
    %v649 = vld [vmem:[%s4 + $0x130] sm:$0xff]
    %v650 = vld [vmem:[%s4 + $0x138] sm:$0xff]
    %v651 = vld [vmem:[%s4 + $0x140] sm:$0xff]
    %v652 = vld [vmem:[%s4 + $0x148] sm:$0xff]
    %v653 = vld [vmem:[%s4 + $0x150] sm:$0xff]
    %v654 = vld [vmem:[%s4 + $0x158] sm:$0xff]
    %v655 = vld [vmem:[%s4 + $0x160] sm:$0xff]
    %v656 = vld [vmem:[%s4 + $0x168] sm:$0xff]
    %v657 = vld [vmem:[%s4 + $0x170] sm:$0xff]
    %v658 = vld [vmem:[%s4 + $0x178] sm:$0xff]
    %v659 = vld [vmem:[%s4 + $0x180] sm:$0xff]
    %v660 = vld [vmem:[%s4 + $0x188] sm:$0xff]
    %v661 = vld [vmem:[%s4 + $0x190] sm:$0xff]
    %v662 = vld [vmem:[%s4 + $0x198] sm:$0xff]
    %v663 = vld [vmem:[%s4 + $0x1a0] sm:$0xff]
    %v664 = vld [vmem:[%s4 + $0x1a8] sm:$0xff]
    %v665 = vld [vmem:[%s4 + $0x1b0] sm:$0xff]
    %v666 = vld [vmem:[%s4 + $0x1b8] sm:$0xff]
    %v667 = vld [vmem:[%s4 + $0x1c0] sm:$0xff]
    %v668 = vld [vmem:[%s4 + $0x1c8] sm:$0xff]
    %v669 = vld [vmem:[%s4 + $0x1d0] sm:$0xff]
    %v670 = vld [vmem:[%s4 + $0x1d8] sm:$0xff]
    %v671 = vld [vmem:[%s4 + $0x1e0] sm:$0xff]
    %v672 = vld [vmem:[%s4 + $0x1e8] sm:$0xff]
    %v673 = vld [vmem:[%s4 + $0x1f0] sm:$0xff]
    %v674 = vld [vmem:[%s4 + $0x1f8] sm:$0xff]
    %v675 = vld [vmem:[#allocation2] sm:$0x3]
    %v676 = vld [vmem:[#allocation3] sm:$0x3]
    %v677 = vld [vmem:[#allocation4] sm:$0xff]
    %678 = vmatprep.subr.mxu0 %v612
    %679 = vmatpush1.msra.mxu0 %v611
    %680 = vmatprep.subr.mxu0 %v616
    %681 = vmatpush1.msra.mxu0 %v615
    %682 = vmatprep.subr.mxu0 %v620
    %683 = vmatpush1.msra.mxu0 %v619
    %684 = vmatprep.subr.mxu0 %v624
    %685 = vmatpush1.msra.mxu0 %v623
    %686 = vmatprep.subr.mxu0 %v628
    %687 = vmatpush1.msra.mxu0 %v627
    %688 = vmatprep.subr.mxu0 %v632
    %689 = vmatpush1.msra.mxu0 %v631
    %690 = vmatprep.subr.mxu0 %v636
    %691 = vmatpush1.msra.mxu0 %v635
    %692 = vmatprep.subr.mxu0 %v640
    %693 = vmatpush1.msra.mxu0 %v639
    %694 = vmatprep.subr.mxu0 %v644
    %695 = vmatpush1.msra.mxu0 %v643
    %696 = vmatprep.subr.mxu0 %v648
    %697 = vmatpush1.msra.mxu0 %v647
    %698 = vmatprep.subr.mxu0 %v652
    %699 = vmatpush1.msra.mxu0 %v651
    %700 = vmatprep.subr.mxu0 %v656
    %701 = vmatpush1.msra.mxu0 %v655
    %702 = vmatprep.subr.mxu0 %v660
    %703 = vmatpush1.msra.mxu0 %v659
    %704 = vmatprep.subr.mxu0 %v664
    %705 = vmatpush1.msra.mxu0 %v663
    %706 = vmatprep.subr.mxu0 %v668
    %707 = vmatpush1.msra.mxu0 %v667
    %708 = vmatprep.subr.mxu0 %v672
    %709 = vmatpush1.msra.mxu0 %v671
    %710 = vmatprep.subr.mxu0 0.0
    %711 = vmatpush1.msra.mxu0 0.0
    %712 = vmatprep.subr.mxu0 0.0
    %713 = vmatpush1.msra.mxu0 0.0
    %714 = vmatprep.subr.mxu0 0.0
    %715 = vmatpush1.msra.mxu0 0.0
    %716 = vmatprep.subr.mxu0 0.0
    %717 = vmatpush1.msra.mxu0 0.0
    %718 = vmatprep.subr.mxu0 0.0
    %719 = vmatpush1.msra.mxu0 0.0
    %720 = vmatprep.subr.mxu0 0.0
    %721 = vmatpush1.msra.mxu0 0.0
    %722 = vmatprep.subr.mxu0 0.0
    %723 = vmatpush1.msra.mxu0 0.0
    %724 = vmatprep.subr.mxu0 0.0
    %725 = vmatpush1.msra.mxu0 0.0
    %726 = vmatprep.subr.mxu0 0.0
    %727 = vmatpush1.msra.mxu0 0.0
    %728 = vmatprep.subr.mxu0 0.0
    %729 = vmatpush1.msra.mxu0 0.0
    %730 = vmatprep.subr.mxu0 0.0
    %731 = vmatpush1.msra.mxu0 0.0
    %732 = vmatprep.subr.mxu0 0.0
    %733 = vmatpush1.msra.mxu0 0.0
    %734 = vmatprep.subr.mxu0 0.0
    %735 = vmatpush1.msra.mxu0 0.0
    %736 = vmatprep.subr.mxu0 0.0
    %737 = vmatpush1.msra.mxu0 0.0
    %738 = vmatprep.subr.mxu0 0.0
    %739 = vmatpush1.msra.mxu0 0.0
    %740 = vmatprep.subr.mxu0 0.0
    %741 = vmatpush1.msra.mxu0 0.0
    %742 = vmatprep.mubr.f32.mxu0 0.0
    %743 = vmatmul.mubr.f32.gmra.mrb[0].mxu0 %v675
    %v744 = vpop.f32.mrb[0].mxu0
    %v745 = vadd.f32 0.0, %v744
    %v746 = vpop.f32.mrb[0].mxu0
    %v747 = vadd.f32 0.0, %v746
    %748 = vdwg.mxu0
    %749 = vmatprep.subr.mxu0 %v614
    %750 = vmatpush1.msra.mxu0 %v613
    %751 = vmatprep.subr.mxu0 %v618
    %752 = vmatpush1.msra.mxu0 %v617
    %753 = vmatprep.subr.mxu0 %v622
    %754 = vmatpush1.msra.mxu0 %v621
    %755 = vmatprep.subr.mxu0 %v626
    %756 = vmatpush1.msra.mxu0 %v625
    %757 = vmatprep.subr.mxu0 %v630
    %758 = vmatpush1.msra.mxu0 %v629
    %759 = vmatprep.subr.mxu0 %v634
    %760 = vmatpush1.msra.mxu0 %v633
    %761 = vmatprep.subr.mxu0 %v638
    %762 = vmatpush1.msra.mxu0 %v637
    %763 = vmatprep.subr.mxu0 %v642
    %764 = vmatpush1.msra.mxu0 %v641
    %765 = vmatprep.subr.mxu0 %v646
    %766 = vmatpush1.msra.mxu0 %v645
    %767 = vmatprep.subr.mxu0 %v650
    %768 = vmatpush1.msra.mxu0 %v649
    %769 = vmatprep.subr.mxu0 %v654
    %770 = vmatpush1.msra.mxu0 %v653
    %771 = vmatprep.subr.mxu0 %v658
    %772 = vmatpush1.msra.mxu0 %v657
    %773 = vmatprep.subr.mxu0 %v662
    %774 = vmatpush1.msra.mxu0 %v661
    %775 = vmatprep.subr.mxu0 %v666
    %776 = vmatpush1.msra.mxu0 %v665
    %777 = vmatprep.subr.mxu0 %v670
    %778 = vmatpush1.msra.mxu0 %v669
    %779 = vmatprep.subr.mxu0 %v674
    %780 = vmatpush1.msra.mxu0 %v673
    %781 = vmatprep.subr.mxu0 0.0
    %782 = vmatpush1.msra.mxu0 0.0
    %783 = vmatprep.subr.mxu0 0.0
    %784 = vmatpush1.msra.mxu0 0.0
    %785 = vmatprep.subr.mxu0 0.0
    %786 = vmatpush1.msra.mxu0 0.0
    %787 = vmatprep.subr.mxu0 0.0
    %788 = vmatpush1.msra.mxu0 0.0
    %789 = vmatprep.subr.mxu0 0.0
    %790 = vmatpush1.msra.mxu0 0.0
    %791 = vmatprep.subr.mxu0 0.0
    %792 = vmatpush1.msra.mxu0 0.0
    %793 = vmatprep.subr.mxu0 0.0
    %794 = vmatpush1.msra.mxu0 0.0
    %795 = vmatprep.subr.mxu0 0.0
    %796 = vmatpush1.msra.mxu0 0.0
    %797 = vmatprep.subr.mxu0 0.0
    %798 = vmatpush1.msra.mxu0 0.0
    %799 = vmatprep.subr.mxu0 0.0
    %800 = vmatpush1.msra.mxu0 0.0
    %801 = vmatprep.subr.mxu0 0.0
    %802 = vmatpush1.msra.mxu0 0.0
    %803 = vmatprep.subr.mxu0 0.0
    %804 = vmatpush1.msra.mxu0 0.0
    %805 = vmatprep.subr.mxu0 0.0
    %806 = vmatpush1.msra.mxu0 0.0
    %807 = vmatprep.subr.mxu0 0.0
    %808 = vmatpush1.msra.mxu0 0.0
    %809 = vmatprep.subr.mxu0 0.0
    %810 = vmatpush1.msra.mxu0 0.0
    %811 = vmatprep.subr.mxu0 0.0
    %812 = vmatpush1.msra.mxu0 0.0
    %813 = vmatprep.mubr.f32.mxu0 0.0
    %814 = vmatmul.mubr.f32.gmra.mrb[0].mxu0 %v675
    %v815 = vpop.f32.mrb[0].mxu0
    %v816 = vadd.f32 0.0, %v815
    %v817 = vpop.f32.mrb[0].mxu0
    %v818 = vadd.f32 0.0, %v817
    %819 = vdwg.mxu0
    %v824 = vcombine.low %v745, %v747
    %v825 = vcombine.low %v816, %v818
    %v827 = vunpack.c.l.s4 1983009808
    %v828 = vunpack.c.0.s8 %v827
    %v829 = vlaneseq
    %v830 = vshrl.u32 %v829, 7
    %v831 = vsub.s32 %v828, %v830
    %v832 = vrot.slane %v824, %v831
    %v834 = vunpack.c.l.s4 1983009808
    %v835 = vunpack.c.0.s8 %v834
    %v836 = vlaneseq
    %v837 = vshrl.u32 %v836, 7
    %v838 = vsub.s32 %v835, %v837
    %v839 = vrot.slane %v825, %v838
    %v840 = vcombine.low %v832, %v839
    %v842 = vadd.f32 %v677, %v840
    %v843 = vxor.u32 %v842, 2147483648
    %v844 = vmul.f32 %v843, 1.442695
    %v845 = vpow.pop %v844
    %v846 = vadd.f32 %v845, 1.0
    %v847 = vrcp.pop %v846
    %v848 = vmul.f32 1.0, %v847
    %v850 = vrot.slane %v842, 6
    %v852 = vtanh.pop %v850
    %v854 = vrot.slane %v848, 2
    %v856 = vmul.f32 %v854, %v676
    %v857 = vmul.f32 %v848, %v852
    %v858 = vadd.f32 %v856, %v857
    %v859 = vtanh.pop %v858
    %v860 = vrot.slane %v848, 4
    %v862 = vmul.f32 %v860, %v859
    %863 = vst [vmem:[#allocation5] sm:$0x3] %v862
    %s864 = scalar_lea.vmem [#allocation4], 8
    %v865 = vld [vmem:[%s864] sm:$0xff]
    %866 = vmatprep.subr.mxu0 %v612
    %867 = vmatpush1.msra.mxu0 %v611
    %868 = vmatprep.subr.mxu0 %v616
    %869 = vmatpush1.msra.mxu0 %v615
    %870 = vmatprep.subr.mxu0 %v620
    %871 = vmatpush1.msra.mxu0 %v619
    %872 = vmatprep.subr.mxu0 %v624
    %873 = vmatpush1.msra.mxu0 %v623
    %874 = vmatprep.subr.mxu0 %v628
    %875 = vmatpush1.msra.mxu0 %v627
    %876 = vmatprep.subr.mxu0 %v632
    %877 = vmatpush1.msra.mxu0 %v631
    %878 = vmatprep.subr.mxu0 %v636
    %879 = vmatpush1.msra.mxu0 %v635
    %880 = vmatprep.subr.mxu0 %v640
    %881 = vmatpush1.msra.mxu0 %v639
    %882 = vmatprep.subr.mxu0 %v644
    %883 = vmatpush1.msra.mxu0 %v643
    %884 = vmatprep.subr.mxu0 %v648
    %885 = vmatpush1.msra.mxu0 %v647
    %886 = vmatprep.subr.mxu0 %v652
    %887 = vmatpush1.msra.mxu0 %v651
    %888 = vmatprep.subr.mxu0 %v656
    %889 = vmatpush1.msra.mxu0 %v655
    %890 = vmatprep.subr.mxu0 %v660
    %891 = vmatpush1.msra.mxu0 %v659
    %892 = vmatprep.subr.mxu0 %v664
    %893 = vmatpush1.msra.mxu0 %v663
    %894 = vmatprep.subr.mxu0 %v668
    %895 = vmatpush1.msra.mxu0 %v667
    %896 = vmatprep.subr.mxu0 %v672
    %897 = vmatpush1.msra.mxu0 %v671
    %898 = vmatprep.subr.mxu0 0.0
    %899 = vmatpush1.msra.mxu0 0.0
    %900 = vmatprep.subr.mxu0 0.0
    %901 = vmatpush1.msra.mxu0 0.0
    %902 = vmatprep.subr.mxu0 0.0
    %903 = vmatpush1.msra.mxu0 0.0
    %904 = vmatprep.subr.mxu0 0.0
    %905 = vmatpush1.msra.mxu0 0.0
    %906 = vmatprep.subr.mxu0 0.0
    %907 = vmatpush1.msra.mxu0 0.0
    %908 = vmatprep.subr.mxu0 0.0
    %909 = vmatpush1.msra.mxu0 0.0
    %910 = vmatprep.subr.mxu0 0.0
    %911 = vmatpush1.msra.mxu0 0.0
    %912 = vmatprep.subr.mxu0 0.0
    %913 = vmatpush1.msra.mxu0 0.0
    %914 = vmatprep.subr.mxu0 0.0
    %915 = vmatpush1.msra.mxu0 0.0
    %916 = vmatprep.subr.mxu0 0.0
    %917 = vmatpush1.msra.mxu0 0.0
    %918 = vmatprep.subr.mxu0 0.0
    %919 = vmatpush1.msra.mxu0 0.0
    %920 = vmatprep.subr.mxu0 0.0
    %921 = vmatpush1.msra.mxu0 0.0
    %922 = vmatprep.subr.mxu0 0.0
    %923 = vmatpush1.msra.mxu0 0.0
    %924 = vmatprep.subr.mxu0 0.0
    %925 = vmatpush1.msra.mxu0 0.0
    %926 = vmatprep.subr.mxu0 0.0
    %927 = vmatpush1.msra.mxu0 0.0
    %928 = vmatprep.subr.mxu0 0.0
    %929 = vmatpush1.msra.mxu0 0.0
    %930 = vmatprep.mubr.f32.mxu0 0.0
    %931 = vmatmul.mubr.f32.gmra.mrb[0].mxu0 %v862
    %v932 = vpop.f32.mrb[0].mxu0
    %v933 = vadd.f32 0.0, %v932
    %v934 = vpop.f32.mrb[0].mxu0
    %v935 = vadd.f32 0.0, %v934
    %936 = vdwg.mxu0
    %937 = vmatprep.subr.mxu0 %v614
    %938 = vmatpush1.msra.mxu0 %v613
    %939 = vmatprep.subr.mxu0 %v618
    %940 = vmatpush1.msra.mxu0 %v617
    %941 = vmatprep.subr.mxu0 %v622
    %942 = vmatpush1.msra.mxu0 %v621
    %943 = vmatprep.subr.mxu0 %v626
    %944 = vmatpush1.msra.mxu0 %v625
    %945 = vmatprep.subr.mxu0 %v630
    %946 = vmatpush1.msra.mxu0 %v629
    %947 = vmatprep.subr.mxu0 %v634
    %948 = vmatpush1.msra.mxu0 %v633
    %949 = vmatprep.subr.mxu0 %v638
    %950 = vmatpush1.msra.mxu0 %v637
    %951 = vmatprep.subr.mxu0 %v642
    %952 = vmatpush1.msra.mxu0 %v641
    %953 = vmatprep.subr.mxu0 %v646
    %954 = vmatpush1.msra.mxu0 %v645
    %955 = vmatprep.subr.mxu0 %v650
    %956 = vmatpush1.msra.mxu0 %v649
    %957 = vmatprep.subr.mxu0 %v654
    %958 = vmatpush1.msra.mxu0 %v653
    %959 = vmatprep.subr.mxu0 %v658
    %960 = vmatpush1.msra.mxu0 %v657
    %961 = vmatprep.subr.mxu0 %v662
    %962 = vmatpush1.msra.mxu0 %v661
    %963 = vmatprep.subr.mxu0 %v666
    %964 = vmatpush1.msra.mxu0 %v665
    %965 = vmatprep.subr.mxu0 %v670
    %966 = vmatpush1.msra.mxu0 %v669
    %967 = vmatprep.subr.mxu0 %v674
    %968 = vmatpush1.msra.mxu0 %v673
    %969 = vmatprep.subr.mxu0 0.0
    %970 = vmatpush1.msra.mxu0 0.0
    %971 = vmatprep.subr.mxu0 0.0
    %972 = vmatpush1.msra.mxu0 0.0
    %973 = vmatprep.subr.mxu0 0.0
    %974 = vmatpush1.msra.mxu0 0.0
    %975 = vmatprep.subr.mxu0 0.0
    %976 = vmatpush1.msra.mxu0 0.0
    %977 = vmatprep.subr.mxu0 0.0
    %978 = vmatpush1.msra.mxu0 0.0
    %979 = vmatprep.subr.mxu0 0.0
    %980 = vmatpush1.msra.mxu0 0.0
    %981 = vmatprep.subr.mxu0 0.0
    %982 = vmatpush1.msra.mxu0 0.0
    %983 = vmatprep.subr.mxu0 0.0
    %984 = vmatpush1.msra.mxu0 0.0
    %985 = vmatprep.subr.mxu0 0.0
    %986 = vmatpush1.msra.mxu0 0.0
    %987 = vmatprep.subr.mxu0 0.0
    %988 = vmatpush1.msra.mxu0 0.0
    %989 = vmatprep.subr.mxu0 0.0
    %990 = vmatpush1.msra.mxu0 0.0
    %991 = vmatprep.subr.mxu0 0.0
    %992 = vmatpush1.msra.mxu0 0.0
    %993 = vmatprep.subr.mxu0 0.0
    %994 = vmatpush1.msra.mxu0 0.0
    %995 = vmatprep.subr.mxu0 0.0
    %996 = vmatpush1.msra.mxu0 0.0
    %997 = vmatprep.subr.mxu0 0.0
    %998 = vmatpush1.msra.mxu0 0.0
    %999 = vmatprep.subr.mxu0 0.0
    %1000 = vmatpush1.msra.mxu0 0.0
    %1001 = vmatprep.mubr.f32.mxu0 0.0
    %1002 = vmatmul.mubr.f32.gmra.mrb[0].mxu0 %v862
    %v1003 = vpop.f32.mrb[0].mxu0
    %v1004 = vadd.f32 0.0, %v1003
    %v1005 = vpop.f32.mrb[0].mxu0
    %v1006 = vadd.f32 0.0, %v1005
    %1007 = vdwg.mxu0
    %v1012 = vcombine.low %v933, %v935
    %v1013 = vcombine.low %v1004, %v1006
    %v1015 = vunpack.c.l.s4 1983009808
    %v1016 = vunpack.c.0.s8 %v1015
    %v1017 = vlaneseq
    %v1018 = vshrl.u32 %v1017, 7
    %v1019 = vsub.s32 %v1016, %v1018
    %v1020 = vrot.slane %v1012, %v1019
    %v1022 = vunpack.c.l.s4 1983009808
    %v1023 = vunpack.c.0.s8 %v1022
    %v1024 = vlaneseq
    %v1025 = vshrl.u32 %v1024, 7
    %v1026 = vsub.s32 %v1023, %v1025
    %v1027 = vrot.slane %v1013, %v1026
    %v1028 = vcombine.low %v1020, %v1027
    %v1030 = vadd.f32 %v865, %v1028
    %v1031 = vxor.u32 %v1030, 2147483648
    %v1032 = vmul.f32 %v1031, 1.442695
    %v1033 = vpow.pop %v1032
    %v1034 = vadd.f32 %v1033, 1.0
    %v1035 = vrcp.pop %v1034
    %v1036 = vmul.f32 1.0, %v1035
    %v1038 = vrot.slane %v1030, 6
    %v1040 = vtanh.pop %v1038
    %v1042 = vrot.slane %v1036, 2
    %v1044 = vmul.f32 %v1042, %v858
    %v1045 = vmul.f32 %v1036, %v1040
    %v1046 = vadd.f32 %v1044, %v1045
    %v1047 = vtanh.pop %v1046
    %v1048 = vrot.slane %v1036, 4
    %v1050 = vmul.f32 %v1048, %v1047
    %s1051 = scalar_lea.vmem [#allocation5], 2
    %1052 = vst [vmem:[%s1051] sm:$0x3] %v1050
    %s1053 = scalar_lea.vmem [#allocation4], 16
    %v1054 = vld [vmem:[%s1053] sm:$0xff]
    %1055 = vmatprep.subr.mxu0 %v612
    %1056 = vmatpush1.msra.mxu0 %v611
    %1057 = vmatprep.subr.mxu0 %v616
    %1058 = vmatpush1.msra.mxu0 %v615
    %1059 = vmatprep.subr.mxu0 %v620
    %1060 = vmatpush1.msra.mxu0 %v619
    %1061 = vmatprep.subr.mxu0 %v624
    %1062 = vmatpush1.msra.mxu0 %v623
    %1063 = vmatprep.subr.mxu0 %v628
    %1064 = vmatpush1.msra.mxu0 %v627
    %1065 = vmatprep.subr.mxu0 %v632
    %1066 = vmatpush1.msra.mxu0 %v631
    %1067 = vmatprep.subr.mxu0 %v636
    %1068 = vmatpush1.msra.mxu0 %v635
    %1069 = vmatprep.subr.mxu0 %v640
    %1070 = vmatpush1.msra.mxu0 %v639
    %1071 = vmatprep.subr.mxu0 %v644
    %1072 = vmatpush1.msra.mxu0 %v643
    %1073 = vmatprep.subr.mxu0 %v648
    %1074 = vmatpush1.msra.mxu0 %v647
    %1075 = vmatprep.subr.mxu0 %v652
    %1076 = vmatpush1.msra.mxu0 %v651
    %1077 = vmatprep.subr.mxu0 %v656
    %1078 = vmatpush1.msra.mxu0 %v655
    %1079 = vmatprep.subr.mxu0 %v660
    %1080 = vmatpush1.msra.mxu0 %v659
    %1081 = vmatprep.subr.mxu0 %v664
    %1082 = vmatpush1.msra.mxu0 %v663
    %1083 = vmatprep.subr.mxu0 %v668
    %1084 = vmatpush1.msra.mxu0 %v667
    %1085 = vmatprep.subr.mxu0 %v672
    %1086 = vmatpush1.msra.mxu0 %v671
    %1087 = vmatprep.subr.mxu0 0.0
    %1088 = vmatpush1.msra.mxu0 0.0
    %1089 = vmatprep.subr.mxu0 0.0
    %1090 = vmatpush1.msra.mxu0 0.0
    %1091 = vmatprep.subr.mxu0 0.0
    %1092 = vmatpush1.msra.mxu0 0.0
    %1093 = vmatprep.subr.mxu0 0.0
    %1094 = vmatpush1.msra.mxu0 0.0
    %1095 = vmatprep.subr.mxu0 0.0
    %1096 = vmatpush1.msra.mxu0 0.0
    %1097 = vmatprep.subr.mxu0 0.0
    %1098 = vmatpush1.msra.mxu0 0.0
    %1099 = vmatprep.subr.mxu0 0.0
    %1100 = vmatpush1.msra.mxu0 0.0
    %1101 = vmatprep.subr.mxu0 0.0
    %1102 = vmatpush1.msra.mxu0 0.0
    %1103 = vmatprep.subr.mxu0 0.0
    %1104 = vmatpush1.msra.mxu0 0.0
    %1105 = vmatprep.subr.mxu0 0.0
    %1106 = vmatpush1.msra.mxu0 0.0
    %1107 = vmatprep.subr.mxu0 0.0
    %1108 = vmatpush1.msra.mxu0 0.0
    %1109 = vmatprep.subr.mxu0 0.0
    %1110 = vmatpush1.msra.mxu0 0.0
    %1111 = vmatprep.subr.mxu0 0.0
    %1112 = vmatpush1.msra.mxu0 0.0
    %1113 = vmatprep.subr.mxu0 0.0
    %1114 = vmatpush1.msra.mxu0 0.0
    %1115 = vmatprep.subr.mxu0 0.0
    %1116 = vmatpush1.msra.mxu0 0.0
    %1117 = vmatprep.subr.mxu0 0.0
    %1118 = vmatpush1.msra.mxu0 0.0
    %1119 = vmatprep.mubr.f32.mxu0 0.0
    %1120 = vmatmul.mubr.f32.gmra.mrb[0].mxu0 %v1050
    %v1121 = vpop.f32.mrb[0].mxu0
    %v1122 = vadd.f32 0.0, %v1121
    %v1123 = vpop.f32.mrb[0].mxu0
    %v1124 = vadd.f32 0.0, %v1123
    %1125 = vdwg.mxu0
    %1126 = vmatprep.subr.mxu0 %v614
    %1127 = vmatpush1.msra.mxu0 %v613
    %1128 = vmatprep.subr.mxu0 %v618
    %1129 = vmatpush1.msra.mxu0 %v617
    %1130 = vmatprep.subr.mxu0 %v622
    %1131 = vmatpush1.msra.mxu0 %v621
    %1132 = vmatprep.subr.mxu0 %v626
    %1133 = vmatpush1.msra.mxu0 %v625
    %1134 = vmatprep.subr.mxu0 %v630
    %1135 = vmatpush1.msra.mxu0 %v629
    %1136 = vmatprep.subr.mxu0 %v634
    %1137 = vmatpush1.msra.mxu0 %v633
    %1138 = vmatprep.subr.mxu0 %v638
    %1139 = vmatpush1.msra.mxu0 %v637
    %1140 = vmatprep.subr.mxu0 %v642
    %1141 = vmatpush1.msra.mxu0 %v641
    %1142 = vmatprep.subr.mxu0 %v646
    %1143 = vmatpush1.msra.mxu0 %v645
    %1144 = vmatprep.subr.mxu0 %v650
    %1145 = vmatpush1.msra.mxu0 %v649
    %1146 = vmatprep.subr.mxu0 %v654
    %1147 = vmatpush1.msra.mxu0 %v653
    %1148 = vmatprep.subr.mxu0 %v658
    %1149 = vmatpush1.msra.mxu0 %v657
    %1150 = vmatprep.subr.mxu0 %v662
    %1151 = vmatpush1.msra.mxu0 %v661
    %1152 = vmatprep.subr.mxu0 %v666
    %1153 = vmatpush1.msra.mxu0 %v665
    %1154 = vmatprep.subr.mxu0 %v670
    %1155 = vmatpush1.msra.mxu0 %v669
    %1156 = vmatprep.subr.mxu0 %v674
    %1157 = vmatpush1.msra.mxu0 %v673
    %1158 = vmatprep.subr.mxu0 0.0
    %1159 = vmatpush1.msra.mxu0 0.0
    %1160 = vmatprep.subr.mxu0 0.0
    %1161 = vmatpush1.msra.mxu0 0.0
    %1162 = vmatprep.subr.mxu0 0.0
    %1163 = vmatpush1.msra.mxu0 0.0
    %1164 = vmatprep.subr.mxu0 0.0
    %1165 = vmatpush1.msra.mxu0 0.0
    %1166 = vmatprep.subr.mxu0 0.0
    %1167 = vmatpush1.msra.mxu0 0.0
    %1168 = vmatprep.subr.mxu0 0.0
    %1169 = vmatpush1.msra.mxu0 0.0
    %1170 = vmatprep.subr.mxu0 0.0
    %1171 = vmatpush1.msra.mxu0 0.0
    %1172 = vmatprep.subr.mxu0 0.0
    %1173 = vmatpush1.msra.mxu0 0.0
    %1174 = vmatprep.subr.mxu0 0.0
    %1175 = vmatpush1.msra.mxu0 0.0
    %1176 = vmatprep.subr.mxu0 0.0
    %1177 = vmatpush1.msra.mxu0 0.0
    %1178 = vmatprep.subr.mxu0 0.0
    %1179 = vmatpush1.msra.mxu0 0.0
    %1180 = vmatprep.subr.mxu0 0.0
    %1181 = vmatpush1.msra.mxu0 0.0
    %1182 = vmatprep.subr.mxu0 0.0
    %1183 = vmatpush1.msra.mxu0 0.0
    %1184 = vmatprep.subr.mxu0 0.0
    %1185 = vmatpush1.msra.mxu0 0.0
    %1186 = vmatprep.subr.mxu0 0.0
    %1187 = vmatpush1.msra.mxu0 0.0
    %1188 = vmatprep.subr.mxu0 0.0
    %1189 = vmatpush1.msra.mxu0 0.0
    %1190 = vmatprep.mubr.f32.mxu0 0.0
    %1191 = vmatmul.mubr.f32.gmra.mrb[0].mxu0 %v1050
    %v1192 = vpop.f32.mrb[0].mxu0
    %v1193 = vadd.f32 0.0, %v1192
    %v1194 = vpop.f32.mrb[0].mxu0
    %v1195 = vadd.f32 0.0, %v1194
    %1196 = vdwg.mxu0
    %v1201 = vcombine.low %v1122, %v1124
    %v1202 = vcombine.low %v1193, %v1195
    %v1204 = vunpack.c.l.s4 1983009808
    %v1205 = vunpack.c.0.s8 %v1204
    %v1206 = vlaneseq
    %v1207 = vshrl.u32 %v1206, 7
    %v1208 = vsub.s32 %v1205, %v1207
    %v1209 = vrot.slane %v1201, %v1208
    %v1211 = vunpack.c.l.s4 1983009808
    %v1212 = vunpack.c.0.s8 %v1211
    %v1213 = vlaneseq
    %v1214 = vshrl.u32 %v1213, 7
    %v1215 = vsub.s32 %v1212, %v1214
    %v1216 = vrot.slane %v1202, %v1215
    %v1217 = vcombine.low %v1209, %v1216
    %v1219 = vadd.f32 %v1054, %v1217
    %v1220 = vxor.u32 %v1219, 2147483648
    %v1221 = vmul.f32 %v1220, 1.442695
    %v1222 = vpow.pop %v1221
    %v1223 = vadd.f32 %v1222, 1.0
    %v1224 = vrcp.pop %v1223
    %v1225 = vmul.f32 1.0, %v1224
    %v1227 = vrot.slane %v1219, 6
    %v1229 = vtanh.pop %v1227
    %v1231 = vrot.slane %v1225, 2
    %v1233 = vmul.f32 %v1231, %v1046
    %v1234 = vmul.f32 %v1225, %v1229
    %v1235 = vadd.f32 %v1233, %v1234
    %v1236 = vtanh.pop %v1235
    %v1237 = vrot.slane %v1225, 4
    %v1239 = vmul.f32 %v1237, %v1236
    %s1240 = scalar_lea.vmem [#allocation5], 4
    %1241 = vst [vmem:[%s1240] sm:$0x3] %v1239
    %s1242 = scalar_lea.vmem [#allocation4], 24
    %v1243 = vld [vmem:[%s1242] sm:$0xff]
    %1244 = vmatprep.subr.mxu0 %v612
    %1245 = vmatpush1.msra.mxu0 %v611
    %1246 = vmatprep.subr.mxu0 %v616
    %1247 = vmatpush1.msra.mxu0 %v615
    %1248 = vmatprep.subr.mxu0 %v620
    %1249 = vmatpush1.msra.mxu0 %v619
    %1250 = vmatprep.subr.mxu0 %v624
    %1251 = vmatpush1.msra.mxu0 %v623
    %1252 = vmatprep.subr.mxu0 %v628
    %1253 = vmatpush1.msra.mxu0 %v627
    %1254 = vmatprep.subr.mxu0 %v632
    %1255 = vmatpush1.msra.mxu0 %v631
    %1256 = vmatprep.subr.mxu0 %v636
    %1257 = vmatpush1.msra.mxu0 %v635
    %1258 = vmatprep.subr.mxu0 %v640
    %1259 = vmatpush1.msra.mxu0 %v639
    %1260 = vmatprep.subr.mxu0 %v644
    %1261 = vmatpush1.msra.mxu0 %v643
    %1262 = vmatprep.subr.mxu0 %v648
    %1263 = vmatpush1.msra.mxu0 %v647
    %1264 = vmatprep.subr.mxu0 %v652
    %1265 = vmatpush1.msra.mxu0 %v651
    %1266 = vmatprep.subr.mxu0 %v656
    %1267 = vmatpush1.msra.mxu0 %v655
    %1268 = vmatprep.subr.mxu0 %v660
    %1269 = vmatpush1.msra.mxu0 %v659
    %1270 = vmatprep.subr.mxu0 %v664
    %1271 = vmatpush1.msra.mxu0 %v663
    %1272 = vmatprep.subr.mxu0 %v668
    %1273 = vmatpush1.msra.mxu0 %v667
    %1274 = vmatprep.subr.mxu0 %v672
    %1275 = vmatpush1.msra.mxu0 %v671
    %1276 = vmatprep.subr.mxu0 0.0
    %1277 = vmatpush1.msra.mxu0 0.0
    %1278 = vmatprep.subr.mxu0 0.0
    %1279 = vmatpush1.msra.mxu0 0.0
    %1280 = vmatprep.subr.mxu0 0.0
    %1281 = vmatpush1.msra.mxu0 0.0
    %1282 = vmatprep.subr.mxu0 0.0
    %1283 = vmatpush1.msra.mxu0 0.0
    %1284 = vmatprep.subr.mxu0 0.0
    %1285 = vmatpush1.msra.mxu0 0.0
    %1286 = vmatprep.subr.mxu0 0.0
    %1287 = vmatpush1.msra.mxu0 0.0
    %1288 = vmatprep.subr.mxu0 0.0
    %1289 = vmatpush1.msra.mxu0 0.0
    %1290 = vmatprep.subr.mxu0 0.0
    %1291 = vmatpush1.msra.mxu0 0.0
    %1292 = vmatprep.subr.mxu0 0.0
    %1293 = vmatpush1.msra.mxu0 0.0
    %1294 = vmatprep.subr.mxu0 0.0
    %1295 = vmatpush1.msra.mxu0 0.0
    %1296 = vmatprep.subr.mxu0 0.0
    %1297 = vmatpush1.msra.mxu0 0.0
    %1298 = vmatprep.subr.mxu0 0.0
    %1299 = vmatpush1.msra.mxu0 0.0
    %1300 = vmatprep.subr.mxu0 0.0
    %1301 = vmatpush1.msra.mxu0 0.0
    %1302 = vmatprep.subr.mxu0 0.0
    %1303 = vmatpush1.msra.mxu0 0.0
    %1304 = vmatprep.subr.mxu0 0.0
    %1305 = vmatpush1.msra.mxu0 0.0
    %1306 = vmatprep.subr.mxu0 0.0
    %1307 = vmatpush1.msra.mxu0 0.0
    %1308 = vmatprep.mubr.f32.mxu0 0.0
    %1309 = vmatmul.mubr.f32.gmra.mrb[0].mxu0 %v1239
    %v1310 = vpop.f32.mrb[0].mxu0
    %v1311 = vadd.f32 0.0, %v1310
    %v1312 = vpop.f32.mrb[0].mxu0
    %v1313 = vadd.f32 0.0, %v1312
    %1314 = vdwg.mxu0
    %1315 = vmatprep.subr.mxu0 %v614
    %1316 = vmatpush1.msra.mxu0 %v613
    %1317 = vmatprep.subr.mxu0 %v618
    %1318 = vmatpush1.msra.mxu0 %v617
    %1319 = vmatprep.subr.mxu0 %v622
    %1320 = vmatpush1.msra.mxu0 %v621
    %1321 = vmatprep.subr.mxu0 %v626
    %1322 = vmatpush1.msra.mxu0 %v625
    %1323 = vmatprep.subr.mxu0 %v630
    %1324 = vmatpush1.msra.mxu0 %v629
    %1325 = vmatprep.subr.mxu0 %v634
    %1326 = vmatpush1.msra.mxu0 %v633
    %1327 = vmatprep.subr.mxu0 %v638
    %1328 = vmatpush1.msra.mxu0 %v637
    %1329 = vmatprep.subr.mxu0 %v642
    %1330 = vmatpush1.msra.mxu0 %v641
    %1331 = vmatprep.subr.mxu0 %v646
    %1332 = vmatpush1.msra.mxu0 %v645
    %1333 = vmatprep.subr.mxu0 %v650
    %1334 = vmatpush1.msra.mxu0 %v649
    %1335 = vmatprep.subr.mxu0 %v654
    %1336 = vmatpush1.msra.mxu0 %v653
    %1337 = vmatprep.subr.mxu0 %v658
    %1338 = vmatpush1.msra.mxu0 %v657
    %1339 = vmatprep.subr.mxu0 %v662
    %1340 = vmatpush1.msra.mxu0 %v661
    %1341 = vmatprep.subr.mxu0 %v666
    %1342 = vmatpush1.msra.mxu0 %v665
    %1343 = vmatprep.subr.mxu0 %v670
    %1344 = vmatpush1.msra.mxu0 %v669
    %1345 = vmatprep.subr.mxu0 %v674
    %1346 = vmatpush1.msra.mxu0 %v673
    %1347 = vmatprep.subr.mxu0 0.0
    %1348 = vmatpush1.msra.mxu0 0.0
    %1349 = vmatprep.subr.mxu0 0.0
    %1350 = vmatpush1.msra.mxu0 0.0
    %1351 = vmatprep.subr.mxu0 0.0
    %1352 = vmatpush1.msra.mxu0 0.0
    %1353 = vmatprep.subr.mxu0 0.0
    %1354 = vmatpush1.msra.mxu0 0.0
    %1355 = vmatprep.subr.mxu0 0.0
    %1356 = vmatpush1.msra.mxu0 0.0
    %1357 = vmatprep.subr.mxu0 0.0
    %1358 = vmatpush1.msra.mxu0 0.0
    %1359 = vmatprep.subr.mxu0 0.0
    %1360 = vmatpush1.msra.mxu0 0.0
    %1361 = vmatprep.subr.mxu0 0.0
    %1362 = vmatpush1.msra.mxu0 0.0
    %1363 = vmatprep.subr.mxu0 0.0
    %1364 = vmatpush1.msra.mxu0 0.0
    %1365 = vmatprep.subr.mxu0 0.0
    %1366 = vmatpush1.msra.mxu0 0.0
    %1367 = vmatprep.subr.mxu0 0.0
    %1368 = vmatpush1.msra.mxu0 0.0
    %1369 = vmatprep.subr.mxu0 0.0
    %1370 = vmatpush1.msra.mxu0 0.0
    %1371 = vmatprep.subr.mxu0 0.0
    %1372 = vmatpush1.msra.mxu0 0.0
    %1373 = vmatprep.subr.mxu0 0.0
    %1374 = vmatpush1.msra.mxu0 0.0
    %1375 = vmatprep.subr.mxu0 0.0
    %1376 = vmatpush1.msra.mxu0 0.0
    %1377 = vmatprep.subr.mxu0 0.0
    %1378 = vmatpush1.msra.mxu0 0.0
    %1379 = vmatprep.mubr.f32.mxu0 0.0
    %1380 = vmatmul.mubr.f32.gmra.mrb[0].mxu0 %v1239
    %v1381 = vpop.f32.mrb[0].mxu0
    %v1382 = vadd.f32 0.0, %v1381
    %v1383 = vpop.f32.mrb[0].mxu0
    %v1384 = vadd.f32 0.0, %v1383
    %1385 = vdwg.mxu0
    %v1390 = vcombine.low %v1311, %v1313
    %v1391 = vcombine.low %v1382, %v1384
    %v1393 = vunpack.c.l.s4 1983009808
    %v1394 = vunpack.c.0.s8 %v1393
    %v1395 = vlaneseq
    %v1396 = vshrl.u32 %v1395, 7
    %v1397 = vsub.s32 %v1394, %v1396
    %v1398 = vrot.slane %v1390, %v1397
    %v1400 = vunpack.c.l.s4 1983009808
    %v1401 = vunpack.c.0.s8 %v1400
    %v1402 = vlaneseq
    %v1403 = vshrl.u32 %v1402, 7
    %v1404 = vsub.s32 %v1401, %v1403
    %v1405 = vrot.slane %v1391, %v1404
    %v1406 = vcombine.low %v1398, %v1405
    %v1408 = vadd.f32 %v1243, %v1406
    %v1409 = vxor.u32 %v1408, 2147483648
    %v1410 = vmul.f32 %v1409, 1.442695
    %v1411 = vpow.pop %v1410
    %v1412 = vadd.f32 %v1411, 1.0
    %v1413 = vrcp.pop %v1412
    %v1414 = vmul.f32 1.0, %v1413
    %v1416 = vrot.slane %v1408, 6
    %v1418 = vtanh.pop %v1416
    %v1420 = vrot.slane %v1414, 2
    %v1422 = vmul.f32 %v1420, %v1235
    %v1423 = vmul.f32 %v1414, %v1418
    %v1424 = vadd.f32 %v1422, %v1423
    %v1425 = vtanh.pop %v1424
    %v1426 = vrot.slane %v1414, 4
    %v1428 = vmul.f32 %v1426, %v1425
    %s1429 = scalar_lea.vmem [#allocation5], 6
    %1430 = vst [vmem:[%s1429] sm:$0x3] %v1428
    %s1431 = scalar_lea.vmem [#allocation4], 32
    %v1432 = vld [vmem:[%s1431] sm:$0xff]
    %1433 = vmatprep.subr.mxu0 %v612
    %1434 = vmatpush1.msra.mxu0 %v611
    %1435 = vmatprep.subr.mxu0 %v616
    %1436 = vmatpush1.msra.mxu0 %v615
    %1437 = vmatprep.subr.mxu0 %v620
    %1438 = vmatpush1.msra.mxu0 %v619
    %1439 = vmatprep.subr.mxu0 %v624
    %1440 = vmatpush1.msra.mxu0 %v623
    %1441 = vmatprep.subr.mxu0 %v628
    %1442 = vmatpush1.msra.mxu0 %v627
    %1443 = vmatprep.subr.mxu0 %v632
    %1444 = vmatpush1.msra.mxu0 %v631
    %1445 = vmatprep.subr.mxu0 %v636
    %1446 = vmatpush1.msra.mxu0 %v635
    %1447 = vmatprep.subr.mxu0 %v640
    %1448 = vmatpush1.msra.mxu0 %v639
    %1449 = vmatprep.subr.mxu0 %v644
    %1450 = vmatpush1.msra.mxu0 %v643
    %1451 = vmatprep.subr.mxu0 %v648
    %1452 = vmatpush1.msra.mxu0 %v647
    %1453 = vmatprep.subr.mxu0 %v652
    %1454 = vmatpush1.msra.mxu0 %v651
    %1455 = vmatprep.subr.mxu0 %v656
    %1456 = vmatpush1.msra.mxu0 %v655
    %1457 = vmatprep.subr.mxu0 %v660
    %1458 = vmatpush1.msra.mxu0 %v659
    %1459 = vmatprep.subr.mxu0 %v664
    %1460 = vmatpush1.msra.mxu0 %v663
    %1461 = vmatprep.subr.mxu0 %v668
    %1462 = vmatpush1.msra.mxu0 %v667
    %1463 = vmatprep.subr.mxu0 %v672
    %1464 = vmatpush1.msra.mxu0 %v671
    %1465 = vmatprep.subr.mxu0 0.0
    %1466 = vmatpush1.msra.mxu0 0.0
    %1467 = vmatprep.subr.mxu0 0.0
    %1468 = vmatpush1.msra.mxu0 0.0
    %1469 = vmatprep.subr.mxu0 0.0
    %1470 = vmatpush1.msra.mxu0 0.0
    %1471 = vmatprep.subr.mxu0 0.0
    %1472 = vmatpush1.msra.mxu0 0.0
    %1473 = vmatprep.subr.mxu0 0.0
    %1474 = vmatpush1.msra.mxu0 0.0
    %1475 = vmatprep.subr.mxu0 0.0
    %1476 = vmatpush1.msra.mxu0 0.0
    %1477 = vmatprep.subr.mxu0 0.0
    %1478 = vmatpush1.msra.mxu0 0.0
    %1479 = vmatprep.subr.mxu0 0.0
    %1480 = vmatpush1.msra.mxu0 0.0
    %1481 = vmatprep.subr.mxu0 0.0
    %1482 = vmatpush1.msra.mxu0 0.0
    %1483 = vmatprep.subr.mxu0 0.0
    %1484 = vmatpush1.msra.mxu0 0.0
    %1485 = vmatprep.subr.mxu0 0.0
    %1486 = vmatpush1.msra.mxu0 0.0
    %1487 = vmatprep.subr.mxu0 0.0
    %1488 = vmatpush1.msra.mxu0 0.0
    %1489 = vmatprep.subr.mxu0 0.0
    %1490 = vmatpush1.msra.mxu0 0.0
    %1491 = vmatprep.subr.mxu0 0.0
    %1492 = vmatpush1.msra.mxu0 0.0
    %1493 = vmatprep.subr.mxu0 0.0
    %1494 = vmatpush1.msra.mxu0 0.0
    %1495 = vmatprep.subr.mxu0 0.0
    %1496 = vmatpush1.msra.mxu0 0.0
    %1497 = vmatprep.mubr.f32.mxu0 0.0
    %1498 = vmatmul.mubr.f32.gmra.mrb[0].mxu0 %v1428
    %v1499 = vpop.f32.mrb[0].mxu0
    %v1500 = vadd.f32 0.0, %v1499
    %v1501 = vpop.f32.mrb[0].mxu0
    %v1502 = vadd.f32 0.0, %v1501
    %1503 = vdwg.mxu0
    %1504 = vmatprep.subr.mxu0 %v614
    %1505 = vmatpush1.msra.mxu0 %v613
    %1506 = vmatprep.subr.mxu0 %v618
    %1507 = vmatpush1.msra.mxu0 %v617
    %1508 = vmatprep.subr.mxu0 %v622
    %1509 = vmatpush1.msra.mxu0 %v621
    %1510 = vmatprep.subr.mxu0 %v626
    %1511 = vmatpush1.msra.mxu0 %v625
    %1512 = vmatprep.subr.mxu0 %v630
    %1513 = vmatpush1.msra.mxu0 %v629
    %1514 = vmatprep.subr.mxu0 %v634
    %1515 = vmatpush1.msra.mxu0 %v633
    %1516 = vmatprep.subr.mxu0 %v638
    %1517 = vmatpush1.msra.mxu0 %v637
    %1518 = vmatprep.subr.mxu0 %v642
    %1519 = vmatpush1.msra.mxu0 %v641
    %1520 = vmatprep.subr.mxu0 %v646
    %1521 = vmatpush1.msra.mxu0 %v645
    %1522 = vmatprep.subr.mxu0 %v650
    %1523 = vmatpush1.msra.mxu0 %v649
    %1524 = vmatprep.subr.mxu0 %v654
    %1525 = vmatpush1.msra.mxu0 %v653
    %1526 = vmatprep.subr.mxu0 %v658
    %1527 = vmatpush1.msra.mxu0 %v657
    %1528 = vmatprep.subr.mxu0 %v662
    %1529 = vmatpush1.msra.mxu0 %v661
    %1530 = vmatprep.subr.mxu0 %v666
    %1531 = vmatpush1.msra.mxu0 %v665
    %1532 = vmatprep.subr.mxu0 %v670
    %1533 = vmatpush1.msra.mxu0 %v669
    %1534 = vmatprep.subr.mxu0 %v674
    %1535 = vmatpush1.msra.mxu0 %v673
    %1536 = vmatprep.subr.mxu0 0.0
    %1537 = vmatpush1.msra.mxu0 0.0
    %1538 = vmatprep.subr.mxu0 0.0
    %1539 = vmatpush1.msra.mxu0 0.0
    %1540 = vmatprep.subr.mxu0 0.0
    %1541 = vmatpush1.msra.mxu0 0.0
    %1542 = vmatprep.subr.mxu0 0.0
    %1543 = vmatpush1.msra.mxu0 0.0
    %1544 = vmatprep.subr.mxu0 0.0
    %1545 = vmatpush1.msra.mxu0 0.0
    %1546 = vmatprep.subr.mxu0 0.0
    %1547 = vmatpush1.msra.mxu0 0.0
    %1548 = vmatprep.subr.mxu0 0.0
    %1549 = vmatpush1.msra.mxu0 0.0
    %1550 = vmatprep.subr.mxu0 0.0
    %1551 = vmatpush1.msra.mxu0 0.0
    %1552 = vmatprep.subr.mxu0 0.0
    %1553 = vmatpush1.msra.mxu0 0.0
    %1554 = vmatprep.subr.mxu0 0.0
    %1555 = vmatpush1.msra.mxu0 0.0
    %1556 = vmatprep.subr.mxu0 0.0
    %1557 = vmatpush1.msra.mxu0 0.0
    %1558 = vmatprep.subr.mxu0 0.0
    %1559 = vmatpush1.msra.mxu0 0.0
    %1560 = vmatprep.subr.mxu0 0.0
    %1561 = vmatpush1.msra.mxu0 0.0
    %1562 = vmatprep.subr.mxu0 0.0
    %1563 = vmatpush1.msra.mxu0 0.0
    %1564 = vmatprep.subr.mxu0 0.0
    %1565 = vmatpush1.msra.mxu0 0.0
    %1566 = vmatprep.subr.mxu0 0.0
    %1567 = vmatpush1.msra.mxu0 0.0
    %1568 = vmatprep.mubr.f32.mxu0 0.0
    %1569 = vmatmul.mubr.f32.gmra.mrb[0].mxu0 %v1428
    %v1570 = vpop.f32.mrb[0].mxu0
    %v1571 = vadd.f32 0.0, %v1570
    %v1572 = vpop.f32.mrb[0].mxu0
    %v1573 = vadd.f32 0.0, %v1572
    %1574 = vdwg.mxu0
    %v1579 = vcombine.low %v1500, %v1502
    %v1580 = vcombine.low %v1571, %v1573
    %v1582 = vunpack.c.l.s4 1983009808
    %v1583 = vunpack.c.0.s8 %v1582
    %v1584 = vlaneseq
    %v1585 = vshrl.u32 %v1584, 7
    %v1586 = vsub.s32 %v1583, %v1585
    %v1587 = vrot.slane %v1579, %v1586
    %v1589 = vunpack.c.l.s4 1983009808
    %v1590 = vunpack.c.0.s8 %v1589
    %v1591 = vlaneseq
    %v1592 = vshrl.u32 %v1591, 7
    %v1593 = vsub.s32 %v1590, %v1592
    %v1594 = vrot.slane %v1580, %v1593
    %v1595 = vcombine.low %v1587, %v1594
    %v1597 = vadd.f32 %v1432, %v1595
    %v1598 = vxor.u32 %v1597, 2147483648
    %v1599 = vmul.f32 %v1598, 1.442695
    %v1600 = vpow.pop %v1599
    %v1601 = vadd.f32 %v1600, 1.0
    %v1602 = vrcp.pop %v1601
    %v1603 = vmul.f32 1.0, %v1602
    %v1605 = vrot.slane %v1597, 6
    %v1607 = vtanh.pop %v1605
    %v1609 = vrot.slane %v1603, 2
    %v1611 = vmul.f32 %v1609, %v1424
    %v1612 = vmul.f32 %v1603, %v1607
    %v1613 = vadd.f32 %v1611, %v1612
    %v1614 = vtanh.pop %v1613
    %v1615 = vrot.slane %v1603, 4
    %v1617 = vmul.f32 %v1615, %v1614
    %s1618 = scalar_lea.vmem [#allocation5], 8
    %1619 = vst [vmem:[%s1618] sm:$0x3] %v1617
    %s1620 = scalar_lea.vmem [#allocation4], 40
    %v1621 = vld [vmem:[%s1620] sm:$0xff]
    %1622 = vmatprep.subr.mxu0 %v612
    %1623 = vmatpush1.msra.mxu0 %v611
    %1624 = vmatprep.subr.mxu0 %v616
    %1625 = vmatpush1.msra.mxu0 %v615
    %1626 = vmatprep.subr.mxu0 %v620
    %1627 = vmatpush1.msra.mxu0 %v619
    %1628 = vmatprep.subr.mxu0 %v624
    %1629 = vmatpush1.msra.mxu0 %v623
    %1630 = vmatprep.subr.mxu0 %v628
    %1631 = vmatpush1.msra.mxu0 %v627
    %1632 = vmatprep.subr.mxu0 %v632
    %1633 = vmatpush1.msra.mxu0 %v631
    %1634 = vmatprep.subr.mxu0 %v636
    %1635 = vmatpush1.msra.mxu0 %v635
    %1636 = vmatprep.subr.mxu0 %v640
    %1637 = vmatpush1.msra.mxu0 %v639
    %1638 = vmatprep.subr.mxu0 %v644
    %1639 = vmatpush1.msra.mxu0 %v643
    %1640 = vmatprep.subr.mxu0 %v648
    %1641 = vmatpush1.msra.mxu0 %v647
    %1642 = vmatprep.subr.mxu0 %v652
    %1643 = vmatpush1.msra.mxu0 %v651
    %1644 = vmatprep.subr.mxu0 %v656
    %1645 = vmatpush1.msra.mxu0 %v655
    %1646 = vmatprep.subr.mxu0 %v660
    %1647 = vmatpush1.msra.mxu0 %v659
    %1648 = vmatprep.subr.mxu0 %v664
    %1649 = vmatpush1.msra.mxu0 %v663
    %1650 = vmatprep.subr.mxu0 %v668
    %1651 = vmatpush1.msra.mxu0 %v667
    %1652 = vmatprep.subr.mxu0 %v672
    %1653 = vmatpush1.msra.mxu0 %v671
    %1654 = vmatprep.subr.mxu0 0.0
    %1655 = vmatpush1.msra.mxu0 0.0
    %1656 = vmatprep.subr.mxu0 0.0
    %1657 = vmatpush1.msra.mxu0 0.0
    %1658 = vmatprep.subr.mxu0 0.0
    %1659 = vmatpush1.msra.mxu0 0.0
    %1660 = vmatprep.subr.mxu0 0.0
    %1661 = vmatpush1.msra.mxu0 0.0
    %1662 = vmatprep.subr.mxu0 0.0
    %1663 = vmatpush1.msra.mxu0 0.0
    %1664 = vmatprep.subr.mxu0 0.0
    %1665 = vmatpush1.msra.mxu0 0.0
    %1666 = vmatprep.subr.mxu0 0.0
    %1667 = vmatpush1.msra.mxu0 0.0
    %1668 = vmatprep.subr.mxu0 0.0
    %1669 = vmatpush1.msra.mxu0 0.0
    %1670 = vmatprep.subr.mxu0 0.0
    %1671 = vmatpush1.msra.mxu0 0.0
    %1672 = vmatprep.subr.mxu0 0.0
    %1673 = vmatpush1.msra.mxu0 0.0
    %1674 = vmatprep.subr.mxu0 0.0
    %1675 = vmatpush1.msra.mxu0 0.0
    %1676 = vmatprep.subr.mxu0 0.0
    %1677 = vmatpush1.msra.mxu0 0.0
    %1678 = vmatprep.subr.mxu0 0.0
    %1679 = vmatpush1.msra.mxu0 0.0
    %1680 = vmatprep.subr.mxu0 0.0
    %1681 = vmatpush1.msra.mxu0 0.0
    %1682 = vmatprep.subr.mxu0 0.0
    %1683 = vmatpush1.msra.mxu0 0.0
    %1684 = vmatprep.subr.mxu0 0.0
    %1685 = vmatpush1.msra.mxu0 0.0
    %1686 = vmatprep.mubr.f32.mxu0 0.0
    %1687 = vmatmul.mubr.f32.gmra.mrb[0].mxu0 %v1617
    %v1688 = vpop.f32.mrb[0].mxu0
    %v1689 = vadd.f32 0.0, %v1688
    %v1690 = vpop.f32.mrb[0].mxu0
    %v1691 = vadd.f32 0.0, %v1690
    %1692 = vdwg.mxu0
    %1693 = vmatprep.subr.mxu0 %v614
    %1694 = vmatpush1.msra.mxu0 %v613
    %1695 = vmatprep.subr.mxu0 %v618
    %1696 = vmatpush1.msra.mxu0 %v617
    %1697 = vmatprep.subr.mxu0 %v622
    %1698 = vmatpush1.msra.mxu0 %v621
    %1699 = vmatprep.subr.mxu0 %v626
    %1700 = vmatpush1.msra.mxu0 %v625
    %1701 = vmatprep.subr.mxu0 %v630
    %1702 = vmatpush1.msra.mxu0 %v629
    %1703 = vmatprep.subr.mxu0 %v634
    %1704 = vmatpush1.msra.mxu0 %v633
    %1705 = vmatprep.subr.mxu0 %v638
    %1706 = vmatpush1.msra.mxu0 %v637
    %1707 = vmatprep.subr.mxu0 %v642
    %1708 = vmatpush1.msra.mxu0 %v641
    %1709 = vmatprep.subr.mxu0 %v646
    %1710 = vmatpush1.msra.mxu0 %v645
    %1711 = vmatprep.subr.mxu0 %v650
    %1712 = vmatpush1.msra.mxu0 %v649
    %1713 = vmatprep.subr.mxu0 %v654
    %1714 = vmatpush1.msra.mxu0 %v653
    %1715 = vmatprep.subr.mxu0 %v658
    %1716 = vmatpush1.msra.mxu0 %v657
    %1717 = vmatprep.subr.mxu0 %v662
    %1718 = vmatpush1.msra.mxu0 %v661
    %1719 = vmatprep.subr.mxu0 %v666
    %1720 = vmatpush1.msra.mxu0 %v665
    %1721 = vmatprep.subr.mxu0 %v670
    %1722 = vmatpush1.msra.mxu0 %v669
    %1723 = vmatprep.subr.mxu0 %v674
    %1724 = vmatpush1.msra.mxu0 %v673
    %1725 = vmatprep.subr.mxu0 0.0
    %1726 = vmatpush1.msra.mxu0 0.0
    %1727 = vmatprep.subr.mxu0 0.0
    %1728 = vmatpush1.msra.mxu0 0.0
    %1729 = vmatprep.subr.mxu0 0.0
    %1730 = vmatpush1.msra.mxu0 0.0
    %1731 = vmatprep.subr.mxu0 0.0
    %1732 = vmatpush1.msra.mxu0 0.0
    %1733 = vmatprep.subr.mxu0 0.0
    %1734 = vmatpush1.msra.mxu0 0.0
    %1735 = vmatprep.subr.mxu0 0.0
    %1736 = vmatpush1.msra.mxu0 0.0
    %1737 = vmatprep.subr.mxu0 0.0
    %1738 = vmatpush1.msra.mxu0 0.0
    %1739 = vmatprep.subr.mxu0 0.0
    %1740 = vmatpush1.msra.mxu0 0.0
    %1741 = vmatprep.subr.mxu0 0.0
    %1742 = vmatpush1.msra.mxu0 0.0
    %1743 = vmatprep.subr.mxu0 0.0
    %1744 = vmatpush1.msra.mxu0 0.0
    %1745 = vmatprep.subr.mxu0 0.0
    %1746 = vmatpush1.msra.mxu0 0.0
    %1747 = vmatprep.subr.mxu0 0.0
    %1748 = vmatpush1.msra.mxu0 0.0
    %1749 = vmatprep.subr.mxu0 0.0
    %1750 = vmatpush1.msra.mxu0 0.0
    %1751 = vmatprep.subr.mxu0 0.0
    %1752 = vmatpush1.msra.mxu0 0.0
    %1753 = vmatprep.subr.mxu0 0.0
    %1754 = vmatpush1.msra.mxu0 0.0
    %1755 = vmatprep.subr.mxu0 0.0
    %1756 = vmatpush1.msra.mxu0 0.0
    %1757 = vmatprep.mubr.f32.mxu0 0.0
    %1758 = vmatmul.mubr.f32.gmra.mrb[0].mxu0 %v1617
    %v1759 = vpop.f32.mrb[0].mxu0
    %v1760 = vadd.f32 0.0, %v1759
    %v1761 = vpop.f32.mrb[0].mxu0
    %v1762 = vadd.f32 0.0, %v1761
    %1763 = vdwg.mxu0
    %v1768 = vcombine.low %v1689, %v1691
    %v1769 = vcombine.low %v1760, %v1762
    %v1771 = vunpack.c.l.s4 1983009808
    %v1772 = vunpack.c.0.s8 %v1771
    %v1773 = vlaneseq
    %v1774 = vshrl.u32 %v1773, 7
    %v1775 = vsub.s32 %v1772, %v1774
    %v1776 = vrot.slane %v1768, %v1775
    %v1778 = vunpack.c.l.s4 1983009808
    %v1779 = vunpack.c.0.s8 %v1778
    %v1780 = vlaneseq
    %v1781 = vshrl.u32 %v1780, 7
    %v1782 = vsub.s32 %v1779, %v1781
    %v1783 = vrot.slane %v1769, %v1782
    %v1784 = vcombine.low %v1776, %v1783
    %v1786 = vadd.f32 %v1621, %v1784
    %v1787 = vxor.u32 %v1786, 2147483648
    %v1788 = vmul.f32 %v1787, 1.442695
    %v1789 = vpow.pop %v1788
    %v1790 = vadd.f32 %v1789, 1.0
    %v1791 = vrcp.pop %v1790
    %v1792 = vmul.f32 1.0, %v1791
    %v1794 = vrot.slane %v1786, 6
    %v1796 = vtanh.pop %v1794
    %v1798 = vrot.slane %v1792, 2
    %v1800 = vmul.f32 %v1798, %v1613
    %v1801 = vmul.f32 %v1792, %v1796
    %v1802 = vadd.f32 %v1800, %v1801
    %v1803 = vtanh.pop %v1802
    %v1804 = vrot.slane %v1792, 4
    %v1806 = vmul.f32 %v1804, %v1803
    %s1807 = scalar_lea.vmem [#allocation5], 10
    %1808 = vst [vmem:[%s1807] sm:$0x3] %v1806
    %s1809 = scalar_lea.vmem [#allocation4], 48
    %v1810 = vld [vmem:[%s1809] sm:$0xff]
    %1811 = vmatprep.subr.mxu0 %v612
    %1812 = vmatpush1.msra.mxu0 %v611
    %1813 = vmatprep.subr.mxu0 %v616
    %1814 = vmatpush1.msra.mxu0 %v615
    %1815 = vmatprep.subr.mxu0 %v620
    %1816 = vmatpush1.msra.mxu0 %v619
    %1817 = vmatprep.subr.mxu0 %v624
    %1818 = vmatpush1.msra.mxu0 %v623
    %1819 = vmatprep.subr.mxu0 %v628
    %1820 = vmatpush1.msra.mxu0 %v627
    %1821 = vmatprep.subr.mxu0 %v632
    %1822 = vmatpush1.msra.mxu0 %v631
    %1823 = vmatprep.subr.mxu0 %v636
    %1824 = vmatpush1.msra.mxu0 %v635
    %1825 = vmatprep.subr.mxu0 %v640
    %1826 = vmatpush1.msra.mxu0 %v639
    %1827 = vmatprep.subr.mxu0 %v644
    %1828 = vmatpush1.msra.mxu0 %v643
    %1829 = vmatprep.subr.mxu0 %v648
    %1830 = vmatpush1.msra.mxu0 %v647
    %1831 = vmatprep.subr.mxu0 %v652
    %1832 = vmatpush1.msra.mxu0 %v651
    %1833 = vmatprep.subr.mxu0 %v656
    %1834 = vmatpush1.msra.mxu0 %v655
    %1835 = vmatprep.subr.mxu0 %v660
    %1836 = vmatpush1.msra.mxu0 %v659
    %1837 = vmatprep.subr.mxu0 %v664
    %1838 = vmatpush1.msra.mxu0 %v663
    %1839 = vmatprep.subr.mxu0 %v668
    %1840 = vmatpush1.msra.mxu0 %v667
    %1841 = vmatprep.subr.mxu0 %v672
    %1842 = vmatpush1.msra.mxu0 %v671
    %1843 = vmatprep.subr.mxu0 0.0
    %1844 = vmatpush1.msra.mxu0 0.0
    %1845 = vmatprep.subr.mxu0 0.0
    %1846 = vmatpush1.msra.mxu0 0.0
    %1847 = vmatprep.subr.mxu0 0.0
    %1848 = vmatpush1.msra.mxu0 0.0
    %1849 = vmatprep.subr.mxu0 0.0
    %1850 = vmatpush1.msra.mxu0 0.0
    %1851 = vmatprep.subr.mxu0 0.0
    %1852 = vmatpush1.msra.mxu0 0.0
    %1853 = vmatprep.subr.mxu0 0.0
    %1854 = vmatpush1.msra.mxu0 0.0
    %1855 = vmatprep.subr.mxu0 0.0
    %1856 = vmatpush1.msra.mxu0 0.0
    %1857 = vmatprep.subr.mxu0 0.0
    %1858 = vmatpush1.msra.mxu0 0.0
    %1859 = vmatprep.subr.mxu0 0.0
    %1860 = vmatpush1.msra.mxu0 0.0
    %1861 = vmatprep.subr.mxu0 0.0
    %1862 = vmatpush1.msra.mxu0 0.0
    %1863 = vmatprep.subr.mxu0 0.0
    %1864 = vmatpush1.msra.mxu0 0.0
    %1865 = vmatprep.subr.mxu0 0.0
    %1866 = vmatpush1.msra.mxu0 0.0
    %1867 = vmatprep.subr.mxu0 0.0
    %1868 = vmatpush1.msra.mxu0 0.0
    %1869 = vmatprep.subr.mxu0 0.0
    %1870 = vmatpush1.msra.mxu0 0.0
    %1871 = vmatprep.subr.mxu0 0.0
    %1872 = vmatpush1.msra.mxu0 0.0
    %1873 = vmatprep.subr.mxu0 0.0
    %1874 = vmatpush1.msra.mxu0 0.0
    %1875 = vmatprep.mubr.f32.mxu0 0.0
    %1876 = vmatmul.mubr.f32.gmra.mrb[0].mxu0 %v1806
    %v1877 = vpop.f32.mrb[0].mxu0
    %v1878 = vadd.f32 0.0, %v1877
    %v1879 = vpop.f32.mrb[0].mxu0
    %v1880 = vadd.f32 0.0, %v1879
    %1881 = vdwg.mxu0
    %1882 = vmatprep.subr.mxu0 %v614
    %1883 = vmatpush1.msra.mxu0 %v613
    %1884 = vmatprep.subr.mxu0 %v618
    %1885 = vmatpush1.msra.mxu0 %v617
    %1886 = vmatprep.subr.mxu0 %v622
    %1887 = vmatpush1.msra.mxu0 %v621
    %1888 = vmatprep.subr.mxu0 %v626
    %1889 = vmatpush1.msra.mxu0 %v625
    %1890 = vmatprep.subr.mxu0 %v630
    %1891 = vmatpush1.msra.mxu0 %v629
    %1892 = vmatprep.subr.mxu0 %v634
    %1893 = vmatpush1.msra.mxu0 %v633
    %1894 = vmatprep.subr.mxu0 %v638
    %1895 = vmatpush1.msra.mxu0 %v637
    %1896 = vmatprep.subr.mxu0 %v642
    %1897 = vmatpush1.msra.mxu0 %v641
    %1898 = vmatprep.subr.mxu0 %v646
    %1899 = vmatpush1.msra.mxu0 %v645
    %1900 = vmatprep.subr.mxu0 %v650
    %1901 = vmatpush1.msra.mxu0 %v649
    %1902 = vmatprep.subr.mxu0 %v654
    %1903 = vmatpush1.msra.mxu0 %v653
    %1904 = vmatprep.subr.mxu0 %v658
    %1905 = vmatpush1.msra.mxu0 %v657
    %1906 = vmatprep.subr.mxu0 %v662
    %1907 = vmatpush1.msra.mxu0 %v661
    %1908 = vmatprep.subr.mxu0 %v666
    %1909 = vmatpush1.msra.mxu0 %v665
    %1910 = vmatprep.subr.mxu0 %v670
    %1911 = vmatpush1.msra.mxu0 %v669
    %1912 = vmatprep.subr.mxu0 %v674
    %1913 = vmatpush1.msra.mxu0 %v673
    %1914 = vmatprep.subr.mxu0 0.0
    %1915 = vmatpush1.msra.mxu0 0.0
    %1916 = vmatprep.subr.mxu0 0.0
    %1917 = vmatpush1.msra.mxu0 0.0
    %1918 = vmatprep.subr.mxu0 0.0
    %1919 = vmatpush1.msra.mxu0 0.0
    %1920 = vmatprep.subr.mxu0 0.0
    %1921 = vmatpush1.msra.mxu0 0.0
    %1922 = vmatprep.subr.mxu0 0.0
    %1923 = vmatpush1.msra.mxu0 0.0
    %1924 = vmatprep.subr.mxu0 0.0
    %1925 = vmatpush1.msra.mxu0 0.0
    %1926 = vmatprep.subr.mxu0 0.0
    %1927 = vmatpush1.msra.mxu0 0.0
    %1928 = vmatprep.subr.mxu0 0.0
    %1929 = vmatpush1.msra.mxu0 0.0
    %1930 = vmatprep.subr.mxu0 0.0
    %1931 = vmatpush1.msra.mxu0 0.0
    %1932 = vmatprep.subr.mxu0 0.0
    %1933 = vmatpush1.msra.mxu0 0.0
    %1934 = vmatprep.subr.mxu0 0.0
    %1935 = vmatpush1.msra.mxu0 0.0
    %1936 = vmatprep.subr.mxu0 0.0
    %1937 = vmatpush1.msra.mxu0 0.0
    %1938 = vmatprep.subr.mxu0 0.0
    %1939 = vmatpush1.msra.mxu0 0.0
    %1940 = vmatprep.subr.mxu0 0.0
    %1941 = vmatpush1.msra.mxu0 0.0
    %1942 = vmatprep.subr.mxu0 0.0
    %1943 = vmatpush1.msra.mxu0 0.0
    %1944 = vmatprep.subr.mxu0 0.0
    %1945 = vmatpush1.msra.mxu0 0.0
    %1946 = vmatprep.mubr.f32.mxu0 0.0
    %1947 = vmatmul.mubr.f32.gmra.mrb[0].mxu0 %v1806
    %v1948 = vpop.f32.mrb[0].mxu0
    %v1949 = vadd.f32 0.0, %v1948
    %v1950 = vpop.f32.mrb[0].mxu0
    %v1951 = vadd.f32 0.0, %v1950
    %1952 = vdwg.mxu0
    %v1957 = vcombine.low %v1878, %v1880
    %v1958 = vcombine.low %v1949, %v1951
    %v1960 = vunpack.c.l.s4 1983009808
    %v1961 = vunpack.c.0.s8 %v1960
    %v1962 = vlaneseq
    %v1963 = vshrl.u32 %v1962, 7
    %v1964 = vsub.s32 %v1961, %v1963
    %v1965 = vrot.slane %v1957, %v1964
    %v1967 = vunpack.c.l.s4 1983009808
    %v1968 = vunpack.c.0.s8 %v1967
    %v1969 = vlaneseq
    %v1970 = vshrl.u32 %v1969, 7
    %v1971 = vsub.s32 %v1968, %v1970
    %v1972 = vrot.slane %v1958, %v1971
    %v1973 = vcombine.low %v1965, %v1972
    %v1975 = vadd.f32 %v1810, %v1973
    %v1976 = vxor.u32 %v1975, 2147483648
    %v1977 = vmul.f32 %v1976, 1.442695
    %v1978 = vpow.pop %v1977
    %v1979 = vadd.f32 %v1978, 1.0
    %v1980 = vrcp.pop %v1979
    %v1981 = vmul.f32 1.0, %v1980
    %v1983 = vrot.slane %v1975, 6
    %v1985 = vtanh.pop %v1983
    %v1987 = vrot.slane %v1981, 2
    %v1989 = vmul.f32 %v1987, %v1802
    %v1990 = vmul.f32 %v1981, %v1985
    %v1991 = vadd.f32 %v1989, %v1990
    %v1992 = vtanh.pop %v1991
    %v1993 = vrot.slane %v1981, 4
    %v1995 = vmul.f32 %v1993, %v1992
    %s1996 = scalar_lea.vmem [#allocation5], 12
    %1997 = vst [vmem:[%s1996] sm:$0x3] %v1995
    %s1998 = scalar_lea.vmem [#allocation4], 56
    %v1999 = vld [vmem:[%s1998] sm:$0xff]
    %2000 = vmatprep.subr.mxu0 %v612
    %2001 = vmatpush1.msra.mxu0 %v611
    %2002 = vmatprep.subr.mxu0 %v616
    %2003 = vmatpush1.msra.mxu0 %v615
    %2004 = vmatprep.subr.mxu0 %v620
    %2005 = vmatpush1.msra.mxu0 %v619
    %2006 = vmatprep.subr.mxu0 %v624
    %2007 = vmatpush1.msra.mxu0 %v623
    %2008 = vmatprep.subr.mxu0 %v628
    %2009 = vmatpush1.msra.mxu0 %v627
    %2010 = vmatprep.subr.mxu0 %v632
    %2011 = vmatpush1.msra.mxu0 %v631
    %2012 = vmatprep.subr.mxu0 %v636
    %2013 = vmatpush1.msra.mxu0 %v635
    %2014 = vmatprep.subr.mxu0 %v640
    %2015 = vmatpush1.msra.mxu0 %v639
    %2016 = vmatprep.subr.mxu0 %v644
    %2017 = vmatpush1.msra.mxu0 %v643
    %2018 = vmatprep.subr.mxu0 %v648
    %2019 = vmatpush1.msra.mxu0 %v647
    %2020 = vmatprep.subr.mxu0 %v652
    %2021 = vmatpush1.msra.mxu0 %v651
    %2022 = vmatprep.subr.mxu0 %v656
    %2023 = vmatpush1.msra.mxu0 %v655
    %2024 = vmatprep.subr.mxu0 %v660
    %2025 = vmatpush1.msra.mxu0 %v659
    %2026 = vmatprep.subr.mxu0 %v664
    %2027 = vmatpush1.msra.mxu0 %v663
    %2028 = vmatprep.subr.mxu0 %v668
    %2029 = vmatpush1.msra.mxu0 %v667
    %2030 = vmatprep.subr.mxu0 %v672
    %2031 = vmatpush1.msra.mxu0 %v671
    %2032 = vmatprep.subr.mxu0 0.0
    %2033 = vmatpush1.msra.mxu0 0.0
    %2034 = vmatprep.subr.mxu0 0.0
    %2035 = vmatpush1.msra.mxu0 0.0
    %2036 = vmatprep.subr.mxu0 0.0
    %2037 = vmatpush1.msra.mxu0 0.0
    %2038 = vmatprep.subr.mxu0 0.0
    %2039 = vmatpush1.msra.mxu0 0.0
    %2040 = vmatprep.subr.mxu0 0.0
    %2041 = vmatpush1.msra.mxu0 0.0
    %2042 = vmatprep.subr.mxu0 0.0
    %2043 = vmatpush1.msra.mxu0 0.0
    %2044 = vmatprep.subr.mxu0 0.0
    %2045 = vmatpush1.msra.mxu0 0.0
    %2046 = vmatprep.subr.mxu0 0.0
    %2047 = vmatpush1.msra.mxu0 0.0
    %2048 = vmatprep.subr.mxu0 0.0
    %2049 = vmatpush1.msra.mxu0 0.0
    %2050 = vmatprep.subr.mxu0 0.0
    %2051 = vmatpush1.msra.mxu0 0.0
    %2052 = vmatprep.subr.mxu0 0.0
    %2053 = vmatpush1.msra.mxu0 0.0
    %2054 = vmatprep.subr.mxu0 0.0
    %2055 = vmatpush1.msra.mxu0 0.0
    %2056 = vmatprep.subr.mxu0 0.0
    %2057 = vmatpush1.msra.mxu0 0.0
    %2058 = vmatprep.subr.mxu0 0.0
    %2059 = vmatpush1.msra.mxu0 0.0
    %2060 = vmatprep.subr.mxu0 0.0
    %2061 = vmatpush1.msra.mxu0 0.0
    %2062 = vmatprep.subr.mxu0 0.0
    %2063 = vmatpush1.msra.mxu0 0.0
    %2064 = vmatprep.mubr.f32.mxu0 0.0
    %2065 = vmatmul.mubr.f32.gmra.mrb[0].mxu0 %v1995
    %v2066 = vpop.f32.mrb[0].mxu0
    %v2067 = vadd.f32 0.0, %v2066
    %v2068 = vpop.f32.mrb[0].mxu0
    %v2069 = vadd.f32 0.0, %v2068
    %2070 = vdwg.mxu0
    %2071 = vmatprep.subr.mxu0 %v614
    %2072 = vmatpush1.msra.mxu0 %v613
    %2073 = vmatprep.subr.mxu0 %v618
    %2074 = vmatpush1.msra.mxu0 %v617
    %2075 = vmatprep.subr.mxu0 %v622
    %2076 = vmatpush1.msra.mxu0 %v621
    %2077 = vmatprep.subr.mxu0 %v626
    %2078 = vmatpush1.msra.mxu0 %v625
    %2079 = vmatprep.subr.mxu0 %v630
    %2080 = vmatpush1.msra.mxu0 %v629
    %2081 = vmatprep.subr.mxu0 %v634
    %2082 = vmatpush1.msra.mxu0 %v633
    %2083 = vmatprep.subr.mxu0 %v638
    %2084 = vmatpush1.msra.mxu0 %v637
    %2085 = vmatprep.subr.mxu0 %v642
    %2086 = vmatpush1.msra.mxu0 %v641
    %2087 = vmatprep.subr.mxu0 %v646
    %2088 = vmatpush1.msra.mxu0 %v645
    %2089 = vmatprep.subr.mxu0 %v650
    %2090 = vmatpush1.msra.mxu0 %v649
    %2091 = vmatprep.subr.mxu0 %v654
    %2092 = vmatpush1.msra.mxu0 %v653
    %2093 = vmatprep.subr.mxu0 %v658
    %2094 = vmatpush1.msra.mxu0 %v657
    %2095 = vmatprep.subr.mxu0 %v662
    %2096 = vmatpush1.msra.mxu0 %v661
    %2097 = vmatprep.subr.mxu0 %v666
    %2098 = vmatpush1.msra.mxu0 %v665
    %2099 = vmatprep.subr.mxu0 %v670
    %2100 = vmatpush1.msra.mxu0 %v669
    %2101 = vmatprep.subr.mxu0 %v674
    %2102 = vmatpush1.msra.mxu0 %v673
    %2103 = vmatprep.subr.mxu0 0.0
    %2104 = vmatpush1.msra.mxu0 0.0
    %2105 = vmatprep.subr.mxu0 0.0
    %2106 = vmatpush1.msra.mxu0 0.0
    %2107 = vmatprep.subr.mxu0 0.0
    %2108 = vmatpush1.msra.mxu0 0.0
    %2109 = vmatprep.subr.mxu0 0.0
    %2110 = vmatpush1.msra.mxu0 0.0
    %2111 = vmatprep.subr.mxu0 0.0
    %2112 = vmatpush1.msra.mxu0 0.0
    %2113 = vmatprep.subr.mxu0 0.0
    %2114 = vmatpush1.msra.mxu0 0.0
    %2115 = vmatprep.subr.mxu0 0.0
    %2116 = vmatpush1.msra.mxu0 0.0
    %2117 = vmatprep.subr.mxu0 0.0
    %2118 = vmatpush1.msra.mxu0 0.0
    %2119 = vmatprep.subr.mxu0 0.0
    %2120 = vmatpush1.msra.mxu0 0.0
    %2121 = vmatprep.subr.mxu0 0.0
    %2122 = vmatpush1.msra.mxu0 0.0
    %2123 = vmatprep.subr.mxu0 0.0
    %2124 = vmatpush1.msra.mxu0 0.0
    %2125 = vmatprep.subr.mxu0 0.0
    %2126 = vmatpush1.msra.mxu0 0.0
    %2127 = vmatprep.subr.mxu0 0.0
    %2128 = vmatpush1.msra.mxu0 0.0
    %2129 = vmatprep.subr.mxu0 0.0
    %2130 = vmatpush1.msra.mxu0 0.0
    %2131 = vmatprep.subr.mxu0 0.0
    %2132 = vmatpush1.msra.mxu0 0.0
    %2133 = vmatprep.subr.mxu0 0.0
    %2134 = vmatpush1.msra.mxu0 0.0
    %2135 = vmatprep.mubr.f32.mxu0 0.0
    %2136 = vmatmul.mubr.f32.gmra.mrb[0].mxu0 %v1995
    %v2137 = vpop.f32.mrb[0].mxu0
    %v2138 = vadd.f32 0.0, %v2137
    %v2139 = vpop.f32.mrb[0].mxu0
    %v2140 = vadd.f32 0.0, %v2139
    %2141 = vdwg.mxu0
    %v2146 = vcombine.low %v2067, %v2069
    %v2147 = vcombine.low %v2138, %v2140
    %v2149 = vunpack.c.l.s4 1983009808
    %v2150 = vunpack.c.0.s8 %v2149
    %v2151 = vlaneseq
    %v2152 = vshrl.u32 %v2151, 7
    %v2153 = vsub.s32 %v2150, %v2152
    %v2154 = vrot.slane %v2146, %v2153
    %v2156 = vunpack.c.l.s4 1983009808
    %v2157 = vunpack.c.0.s8 %v2156
    %v2158 = vlaneseq
    %v2159 = vshrl.u32 %v2158, 7
    %v2160 = vsub.s32 %v2157, %v2159
    %v2161 = vrot.slane %v2147, %v2160
    %v2162 = vcombine.low %v2154, %v2161
    %v2164 = vadd.f32 %v1999, %v2162
    %v2165 = vxor.u32 %v2164, 2147483648
    %v2166 = vmul.f32 %v2165, 1.442695
    %v2167 = vpow.pop %v2166
    %v2168 = vadd.f32 %v2167, 1.0
    %v2169 = vrcp.pop %v2168
    %v2170 = vmul.f32 1.0, %v2169
    %v2172 = vrot.slane %v2164, 6
    %v2174 = vtanh.pop %v2172
    %v2176 = vrot.slane %v2170, 2
    %v2178 = vmul.f32 %v2176, %v1991
    %v2179 = vmul.f32 %v2170, %v2174
    %v2180 = vadd.f32 %v2178, %v2179
    %v2181 = vtanh.pop %v2180
    %v2182 = vrot.slane %v2170, 4
    %v2184 = vmul.f32 %v2182, %v2181
    %s2185 = scalar_lea.vmem [#allocation5], 14
    %2186 = vst [vmem:[%s2185] sm:$0x3] %v2184
    %2187 = vst [vmem:[#allocation2] sm:$0x3] %v2184
    %2188 = vst [vmem:[#allocation3] sm:$0x3] %v2180
    %v2189 = vld [vmem:[%s6] sm:$0x1]
    %v2190 = vld [vmem:[#allocation5] sm:$0x3]
    %v2191 = vld [vmem:[#allocation5 + $0x2] sm:$0x3]
    %v2192 = vld [vmem:[#allocation5 + $0x4] sm:$0x3]
    %v2193 = vld [vmem:[#allocation5 + $0x6] sm:$0x3]
    %v2194 = vld [vmem:[#allocation5 + $0x8] sm:$0x3]
    %v2195 = vld [vmem:[#allocation5 + $0xa] sm:$0x3]
    %v2196 = vld [vmem:[#allocation5 + $0xc] sm:$0x3]
    %v2197 = vld [vmem:[#allocation5 + $0xe] sm:$0x3]
    %v2199 = vlaneseq
    %v2200 = vshrl.u32 %v2199, 7
    %v2201 = vsub.s32 0, %v2200
    %v2202 = vrot.slane %v2189, %v2201
    %v2204 = vmul.f32 %v2190, %v2202
    %v2205 = vmul.f32 %v2191, %v2202
    %v2206 = vmul.f32 %v2192, %v2202
    %v2207 = vmul.f32 %v2193, %v2202
    %v2208 = vmul.f32 %v2194, %v2202
    %v2209 = vmul.f32 %v2195, %v2202
    %v2210 = vmul.f32 %v2196, %v2202
    %v2211 = vmul.f32 %v2197, %v2202
    %vm2212 = vcmask 1041408
    %v2213 = vsel %vm2212, %v2204, 0.0
    %2214 = vadd.xlane.f32.xlu0 %v2213
    %v2215 = vpop.xlane.xlu0 %2214
    %v2216 = vsel %vm2212, %v2205, 0.0
    %2217 = vadd.xlane.f32.xlu0 %v2216
    %v2218 = vpop.xlane.xlu0 %2217
    %v2219 = vsel %vm2212, %v2206, 0.0
    %2220 = vadd.xlane.f32.xlu0 %v2219
    %v2221 = vpop.xlane.xlu0 %2220
    %v2222 = vsel %vm2212, %v2207, 0.0
    %2223 = vadd.xlane.f32.xlu0 %v2222
    %v2224 = vpop.xlane.xlu0 %2223
    %v2225 = vsel %vm2212, %v2208, 0.0
    %2226 = vadd.xlane.f32.xlu0 %v2225
    %v2227 = vpop.xlane.xlu0 %2226
    %v2228 = vsel %vm2212, %v2209, 0.0
    %2229 = vadd.xlane.f32.xlu0 %v2228
    %v2230 = vpop.xlane.xlu0 %2229
    %v2231 = vsel %vm2212, %v2210, 0.0
    %2232 = vadd.xlane.f32.xlu0 %v2231
    %v2233 = vpop.xlane.xlu0 %2232
    %v2234 = vsel %vm2212, %v2211, 0.0
    %2235 = vadd.xlane.f32.xlu0 %v2234
    %v2236 = vpop.xlane.xlu0 %2235
    %s2237 = sld [smem:[#allocation6]]
    %v2238 = vstv %s2237
    %v2239 = vadd.f32 %v2215, %v2238
    %v2240 = vadd.f32 %v2218, %v2238
    %v2241 = vadd.f32 %v2221, %v2238
    %v2242 = vadd.f32 %v2224, %v2238
    %v2243 = vadd.f32 %v2227, %v2238
    %v2244 = vadd.f32 %v2230, %v2238
    %v2245 = vadd.f32 %v2233, %v2238
    %v2246 = vadd.f32 %v2236, %v2238
    %v2255 = vlaneseq
    %v2256 = vand.u32 %v2255, 127
    %v2257 = vlaneseq
    %v2258 = vshrl.u32 %v2257, 7
    %v2259 = vsub.s32 %v2256, %v2258
    %v2260 = vrot.slane %v2239, %v2259
    %v2261 = vlaneseq
    %v2262 = vshrl.u32 %v2261, 7
    %v2263 = vsub.s32 %v2256, %v2262
    %v2264 = vrot.slane %v2240, %v2263
    %v2265 = vlaneseq
    %v2266 = vshrl.u32 %v2265, 7
    %v2267 = vsub.s32 %v2256, %v2266
    %v2268 = vrot.slane %v2241, %v2267
    %v2269 = vlaneseq
    %v2270 = vshrl.u32 %v2269, 7
    %v2271 = vsub.s32 %v2256, %v2270
    %v2272 = vrot.slane %v2242, %v2271
    %v2273 = vlaneseq
    %v2274 = vshrl.u32 %v2273, 7
    %v2275 = vsub.s32 %v2256, %v2274
    %v2276 = vrot.slane %v2243, %v2275
    %v2277 = vlaneseq
    %v2278 = vshrl.u32 %v2277, 7
    %v2279 = vsub.s32 %v2256, %v2278
    %v2280 = vrot.slane %v2244, %v2279
    %v2281 = vlaneseq
    %v2282 = vshrl.u32 %v2281, 7
    %v2283 = vsub.s32 %v2256, %v2282
    %v2284 = vrot.slane %v2245, %v2283
    %v2285 = vlaneseq
    %v2286 = vshrl.u32 %v2285, 7
    %v2287 = vsub.s32 %v2256, %v2286
    %v2288 = vrot.slane %v2246, %v2287
    %vm2289 = vcmask 1041409
    %v2290 = vsel %vm2289, %v2264, %v2260
    %vm2291 = vcmask 1042434
    %v2292 = vsel %vm2291, %v2268, %v2290
    %vm2293 = vcmask 1043459
    %v2294 = vsel %vm2293, %v2272, %v2292
    %vm2295 = vcmask 1044484
    %v2296 = vsel %vm2295, %v2276, %v2294
    %vm2297 = vcmask 1045509
    %v2298 = vsel %vm2297, %v2280, %v2296
    %vm2299 = vcmask 1046534
    %v2300 = vsel %vm2299, %v2284, %v2298
    %vm2301 = vcmask 1047559
    %v2302 = vsel %vm2301, %v2288, %v2300
    %2304 = vxpose.xlu0.b32.start [1/16] %v2302, 128
    %2305 = vxpose.xlu0.b32.cont [2/16] 0.0, 128
    %2306 = vxpose.xlu0.b32.cont [3/16] 0.0, 128
    %2307 = vxpose.xlu0.b32.cont [4/16] 0.0, 128
    %2308 = vxpose.xlu0.b32.cont [5/16] 0.0, 128
    %2309 = vxpose.xlu0.b32.cont [6/16] 0.0, 128
    %2310 = vxpose.xlu0.b32.cont [7/16] 0.0, 128
    %2311 = vxpose.xlu0.b32.cont [8/16] 0.0, 128
    %2312 = vxpose.xlu0.b32.cont [9/16] 0.0, 128
    %2313 = vxpose.xlu0.b32.cont [10/16] 0.0, 128
    %2314 = vxpose.xlu0.b32.cont [11/16] 0.0, 128
    %2315 = vxpose.xlu0.b32.cont [12/16] 0.0, 128
    %2316 = vxpose.xlu0.b32.cont [13/16] 0.0, 128
    %2317 = vxpose.xlu0.b32.cont [14/16] 0.0, 128
    %2318 = vxpose.xlu0.b32.cont [15/16] 0.0, 128
    %2319 = vxpose.xlu0.b32.end [16/16] 0.0, 128
    %v2320 = vpop.trf.xlu0
    %v2321 = vpop.trf.xlu0
    %v2322 = vpop.trf.xlu0
    %v2323 = vpop.trf.xlu0
    %v2324 = vpop.trf.xlu0
    %v2325 = vpop.trf.xlu0
    %v2326 = vpop.trf.xlu0
    %v2327 = vpop.trf.xlu0
    %v2328 = vpop.trf.xlu0
    %v2329 = vpop.trf.xlu0
    %v2330 = vpop.trf.xlu0
    %v2331 = vpop.trf.xlu0
    %v2332 = vpop.trf.xlu0
    %v2333 = vpop.trf.xlu0
    %v2334 = vpop.trf.xlu0
    %v2335 = vpop.trf.xlu0
    %vm2336 = vcmask 58368
    %2337 = vst.msk [vmem:[#allocation7] sm:$0x3] %vm2336, %v2320
    // Predicated region
    $region46: #{recurrent_value_forward.1} parent=1 // pred_check
      %p2338 = pneg %p40
    $region47: #{recurrent_value_forward.1} parent=1 // pred_check_branch
      %2340 = sbr.rel (%p2338) target = $region49
    $region48: #{recurrent_value_forward.1} parent=1 // pred_region
      %2341 = vst [vmem:[%s11] sm:$0x3] %v2184
      %2342 = vst [vmem:[%s12] sm:$0x3] %v2180
    $region49: #{recurrent_value_forward.1} parent=1 // pred_fallthru
      _
    // Predicated region
    $region50: #{recurrent_value_forward.1} parent=1 // pred_check
      _
    $region51: #{recurrent_value_forward.1} parent=1 // pred_check_branch
      %2344 = sbr.rel (0) target = $region53
    $region52: #{recurrent_value_forward.1} parent=1 // pred_region
      %s2346 = ssub.s32 32, 32
      %2347 = vsyncadd [#allocation8], %s2346
      %s2349 = sshll.u32 [#allocation7], 4
      %s2350 = int_to_ptr.vmem [resolvable:$true] %s2349
      %2352 = dma.vmem_to_hbm [thread:$0]  %s2350, 32, %s10, [#allocation8]
    $region53: #{recurrent_value_forward.1} parent=1 // pred_fallthru
      _
    // Predicated region
    $region54: #{recurrent_value_forward.1} parent=1 // pred_check
      _
    $region55: #{recurrent_value_forward.1} parent=1 // pred_check_branch
      %2354 = sbr.rel (0) target = $region57
    $region56: #{recurrent_value_forward.1} parent=1 // pred_region
      _
    $region57: #{recurrent_value_forward.1} parent=1 // pred_fallthru
      _
    // Predicated region
    $region58: #{recurrent_value_forward.1} parent=1 // pred_check
      _
    $region59: #{recurrent_value_forward.1} parent=1 // pred_check_branch
      %2356 = sbr.rel (0) target = $region61
    $region60: #{recurrent_value_forward.1} parent=1 // pred_region
      _
    $region61: #{recurrent_value_forward.1} parent=1 // pred_fallthru
      _
    // Predicated region
    $region62: #{recurrent_value_forward.1} parent=1 // pred_check
      _
    $region63: #{recurrent_value_forward.1} parent=1 // pred_check_branch
      %2358 = sbr.rel (0) target = $region65
    $region64: #{recurrent_value_forward.1} parent=1 // pred_region
      %2359 = dma.done [#allocation8], 32
    $region65: #{recurrent_value_forward.1} parent=1 // pred_fallthru
      _
    // Predicated region
    $region66: #{recurrent_value_forward.1} parent=1 // pred_check
      _
    $region67: #{recurrent_value_forward.1} parent=1 // pred_check_branch
      %2361 = sbr.rel (0) target = $region69
    $region68: #{recurrent_value_forward.1} parent=1 // pred_region
      _
    $region69: #{recurrent_value_forward.1} parent=1 // pred_fallthru
      _
    // Predicated region
    $region70: #{recurrent_value_forward.1} parent=1 // pred_check
      _
    $region71: #{recurrent_value_forward.1} parent=1 // pred_check_branch
      %2363 = sbr.rel (0) target = $region73
    $region72: #{recurrent_value_forward.1} parent=1 // pred_region
      _
    $region73: #{recurrent_value_forward.1} parent=1 // pred_fallthru
      _
    %2364 = vsyncpa [#allocation8], 1

</llo_original>
